<compile_context>
chip_gen: v7x
topology: tpu7x:2x2x1
jax: 0.10.0
libtpu: 0.0.40
codegen_flags: <defaults>
</compile_context>

<pallas_src>
import functools

import jax
import jax.numpy as jnp
from jax.experimental import pallas as pl
from jax.experimental.pallas import tpu as pltpu

EMBEDDING_DIM = 128            # chosen embedding_dim (128-lane aligned)
D_IN, D_H1, D_H2 = 384, 512, 256
TM_MAX = 512                   # batch tile (multiple of 256 for v6e/v7x MXU, well under VMEM caps)


def _siamese_kernel(x1_ref, x2_ref, x3_ref,
                    w1_ref, b1_ref, w2_ref, b2_ref, w3_ref, b3_ref,
                    o1_ref, o2_ref, o3_ref):
    """One batch tile: run the shared 3-layer MLP on all three branches."""
    # Weights are bf16 and resident in VMEM (constant index_map); load once per tile.
    w1 = w1_ref[...]
    b1 = b1_ref[...]
    w2 = w2_ref[...]
    b2 = b2_ref[...]
    w3 = w3_ref[...]
    b3 = b3_ref[...]

    def branch(x_ref, o_ref):
        x = x_ref[...].astype(jnp.bfloat16)                       # bf16 operands, f32 accumulate
        h1 = jnp.dot(x, w1, preferred_element_type=jnp.float32) + b1
        h1 = jnp.maximum(h1, 0.0).astype(jnp.bfloat16)
        h2 = jnp.dot(h1, w2, preferred_element_type=jnp.float32) + b2
        h2 = jnp.maximum(h2, 0.0).astype(jnp.bfloat16)
        h3 = jnp.dot(h2, w3, preferred_element_type=jnp.float32) + b3
        o_ref[...] = h3.astype(o_ref.dtype)

    branch(x1_ref, o1_ref)
    branch(x2_ref, o2_ref)
    branch(x3_ref, o3_ref)


def _choose_tm(batch):
    """Pick a batch tile that satisfies the (8,128) block rule."""
    if batch <= 8:
        return batch                      # block == full dim: always legal
    return min(TM_MAX, ((batch + 7) // 8) * 8)


@functools.partial(jax.jit, static_argnames=())
def siamese_forward(input1, input2, input3, params):
    """SiameseNetwork.forward: shared-weight embedding MLP applied to three inputs."""
    w1, b1, w2, b2, w3, b3 = params
    batch = input1.shape[0]
    tm = _choose_tm(batch)
    grid = (pl.cdiv(batch, tm),)

    x_spec = pl.BlockSpec((tm, D_IN), lambda i: (i, 0))
    out_spec = pl.BlockSpec((tm, EMBEDDING_DIM), lambda i: (i, 0))
    const = lambda shape: pl.BlockSpec(shape, lambda i: (0, 0))   # resident weights/biases

    out_shape = jax.ShapeDtypeStruct((batch, EMBEDDING_DIM), jnp.float32)
    return pl.pallas_call(
        _siamese_kernel,
        out_shape=(out_shape, out_shape, out_shape),
        grid_spec=pltpu.PrefetchScalarGridSpec(
            num_scalar_prefetch=0,
            grid=grid,
            in_specs=[
                x_spec, x_spec, x_spec,
                const((D_IN, D_H1)), const((1, D_H1)),
                const((D_H1, D_H2)), const((1, D_H2)),
                const((D_H2, EMBEDDING_DIM)), const((1, EMBEDDING_DIM)),
            ],
            out_specs=[out_spec, out_spec, out_spec],
        ),
        compiler_params=pltpu.CompilerParams(
            dimension_semantics=("parallel",),     # shards batch tiles across TCs on v7x
            vmem_limit_bytes=48 << 20,
        ),
    )(input1, input2, input3, w1, b1, w2, b2, w3, b3)


def init_params(key):
    """Deterministic init matching PyTorch Linear shapes.

    Weights stored pre-transposed as [in, out] and cast to bf16 (MXU-native);
    biases kept f32 and added after the f32-accumulated matmul.
    """
    ks = jax.random.split(key, 6)

    def linear(kw, kb, fan_in, fan_out):
        bound = 1.0 / jnp.sqrt(fan_in)
        w = jax.random.uniform(kw, (fan_in, fan_out), jnp.float32, -bound, bound)
        b = jax.random.uniform(kb, (1, fan_out), jnp.float32, -bound, bound)
        return w.astype(jnp.bfloat16), b

    w1, b1 = linear(ks[0], ks[1], D_IN, D_H1)
    w2, b2 = linear(ks[2], ks[3], D_H1, D_H2)
    w3, b3 = linear(ks[4], ks[5], D_H2, EMBEDDING_DIM)
    return (w1, b1, w2, b2, w3, b3)


def _reference(x, params):
    """Plain-JAX reference with the same bf16-operand / f32-accumulate math."""
    w1, b1, w2, b2, w3, b3 = params
    h = jnp.dot(x.astype(jnp.bfloat16), w1, preferred_element_type=jnp.float32) + b1
    h = jnp.maximum(h, 0.0).astype(jnp.bfloat16)
    h = jnp.dot(h, w2, preferred_element_type=jnp.float32) + b2
    h = jnp.maximum(h, 0.0).astype(jnp.bfloat16)
    return jnp.dot(h, w3, preferred_element_type=jnp.float32) + b3


if __name__ == "__main__":
    key = jax.random.PRNGKey(0)
    kp, k1, k2, k3 = jax.random.split(key, 4)
    params = init_params(kp)

    batch = 2
    x1 = jax.random.normal(k1, (batch, D_IN), jnp.float32)
    x2 = jax.random.normal(k2, (batch, D_IN), jnp.float32)
    x3 = jax.random.normal(k3, (batch, D_IN), jnp.float32)

    o1, o2, o3 = siamese_forward(x1, x2, x3, params)
    jax.block_until_ready((o1, o2, o3))

    # Correctness check vs plain-JAX reference of the same (bf16 x f32-acc) math.
    for x, o in ((x1, o1), (x2, o2), (x3, o3)):
        ref = _reference(x, params)
        assert o.shape == (batch, EMBEDDING_DIM)
        assert jnp.allclose(o, ref, atol=2e-3, rtol=2e-3), float(jnp.max(jnp.abs(o - ref)))

    print("KERNEL_OK")
</pallas_src>

<mosaic_0001>
module attributes {stable_mosaic.version = 11 : i64} {
  func.func @_siamese_kernel(%arg0: i32, %arg1: memref<2x384xf32, #tpu.memory_space<vmem>>, %arg2: memref<2x384xf32, #tpu.memory_space<vmem>>, %arg3: memref<2x384xf32, #tpu.memory_space<vmem>>, %arg4: memref<384x512xbf16, #tpu.memory_space<vmem>>, %arg5: memref<1x512xf32, #tpu.memory_space<vmem>>, %arg6: memref<512x256xbf16, #tpu.memory_space<vmem>>, %arg7: memref<1x256xf32, #tpu.memory_space<vmem>>, %arg8: memref<256x128xbf16, #tpu.memory_space<vmem>>, %arg9: memref<1x128xf32, #tpu.memory_space<vmem>>, %arg10: memref<2x128xf32, #tpu.memory_space<vmem>>, %arg11: memref<2x128xf32, #tpu.memory_space<vmem>>, %arg12: memref<2x128xf32, #tpu.memory_space<vmem>>) attributes {dimension_semantics = [#tpu.dimension_semantics<parallel>], iteration_bounds = array<i64: 1>, scalar_prefetch = 0 : i64, scratch_operands = 0 : i64, tpu.core_type = #tpu.core_type<tc>, window_params = [{transform_indices = @transform_0, window_bounds = array<i64: 2, 384>}, {transform_indices = @transform_1, window_bounds = array<i64: 2, 384>}, {transform_indices = @transform_2, window_bounds = array<i64: 2, 384>}, {pipeline_mode = #tpu.pipeline_mode<synchronous>, transform_indices = @transform_3, window_bounds = array<i64: 384, 512>}, {pipeline_mode = #tpu.pipeline_mode<synchronous>, transform_indices = @transform_4, window_bounds = array<i64: 1, 512>}, {pipeline_mode = #tpu.pipeline_mode<synchronous>, transform_indices = @transform_5, window_bounds = array<i64: 512, 256>}, {pipeline_mode = #tpu.pipeline_mode<synchronous>, transform_indices = @transform_6, window_bounds = array<i64: 1, 256>}, {pipeline_mode = #tpu.pipeline_mode<synchronous>, transform_indices = @transform_7, window_bounds = array<i64: 256, 128>}, {pipeline_mode = #tpu.pipeline_mode<synchronous>, transform_indices = @transform_8, window_bounds = array<i64: 1, 128>}, {transform_indices = @transform_9, window_bounds = array<i64: 2, 128>}, {transform_indices = @transform_10, window_bounds = array<i64: 2, 128>}, {transform_indices = @transform_11, window_bounds = array<i64: 2, 128>}]} {
    %c0 = arith.constant 0 : index
    %c0_0 = arith.constant 0 : index
    %0 = vector.load %arg4[%c0, %c0_0] : memref<384x512xbf16, #tpu.memory_space<vmem>>, vector<384x512xbf16>
    %c0_1 = arith.constant 0 : index
    %c0_2 = arith.constant 0 : index
    %1 = vector.load %arg5[%c0_1, %c0_2] : memref<1x512xf32, #tpu.memory_space<vmem>>, vector<1x512xf32>
    %c0_3 = arith.constant 0 : index
    %c0_4 = arith.constant 0 : index
    %2 = vector.load %arg6[%c0_3, %c0_4] : memref<512x256xbf16, #tpu.memory_space<vmem>>, vector<512x256xbf16>
    %c0_5 = arith.constant 0 : index
    %c0_6 = arith.constant 0 : index
    %3 = vector.load %arg7[%c0_5, %c0_6] : memref<1x256xf32, #tpu.memory_space<vmem>>, vector<1x256xf32>
    %c0_7 = arith.constant 0 : index
    %c0_8 = arith.constant 0 : index
    %4 = vector.load %arg8[%c0_7, %c0_8] : memref<256x128xbf16, #tpu.memory_space<vmem>>, vector<256x128xbf16>
    %c0_9 = arith.constant 0 : index
    %c0_10 = arith.constant 0 : index
    %5 = vector.load %arg9[%c0_9, %c0_10] : memref<1x128xf32, #tpu.memory_space<vmem>>, vector<1x128xf32>
    %c0_11 = arith.constant 0 : index
    %c0_12 = arith.constant 0 : index
    %6 = vector.load %arg1[%c0_11, %c0_12] : memref<2x384xf32, #tpu.memory_space<vmem>>, vector<2x384xf32>
    %7 = arith.truncf %6 : vector<2x384xf32> to vector<2x384xbf16>
    %cst = arith.constant dense<0.000000e+00> : vector<2x512xf32>
    %8 = tpu.matmul %7, %0, %cst {dimension_numbers = #tpu.dot_dimension_numbers<[1], [0], [0], [1], [0, 0, 1, 1], [], []>} : vector<2x384xbf16>, vector<384x512xbf16>, vector<2x512xf32> -> vector<2x512xf32>
    %9 = vector.broadcast %1 : vector<1x512xf32> to vector<2x512xf32>
    %10 = arith.addf %8, %9 : vector<2x512xf32>
    %cst_13 = arith.constant 0.000000e+00 : f32
    %11 = vector.broadcast %cst_13 : f32 to vector<2x512xf32>
    %12 = arith.maximumf %10, %11 : vector<2x512xf32>
    %13 = arith.truncf %12 : vector<2x512xf32> to vector<2x512xbf16>
    %cst_14 = arith.constant dense<0.000000e+00> : vector<2x256xf32>
    %14 = tpu.matmul %13, %2, %cst_14 {dimension_numbers = #tpu.dot_dimension_numbers<[1], [0], [0], [1], [0, 0, 1, 1], [], []>} : vector<2x512xbf16>, vector<512x256xbf16>, vector<2x256xf32> -> vector<2x256xf32>
    %15 = vector.broadcast %3 : vector<1x256xf32> to vector<2x256xf32>
    %16 = arith.addf %14, %15 : vector<2x256xf32>
    %cst_15 = arith.constant 0.000000e+00 : f32
    %17 = vector.broadcast %cst_15 : f32 to vector<2x256xf32>
    %18 = arith.maximumf %16, %17 : vector<2x256xf32>
    %19 = arith.truncf %18 : vector<2x256xf32> to vector<2x256xbf16>
    %cst_16 = arith.constant dense<0.000000e+00> : vector<2x128xf32>
    %20 = tpu.matmul %19, %4, %cst_16 {dimension_numbers = #tpu.dot_dimension_numbers<[1], [0], [0], [1], [0, 0, 1, 1], [], []>} : vector<2x256xbf16>, vector<256x128xbf16>, vector<2x128xf32> -> vector<2x128xf32>
    %21 = vector.broadcast %5 : vector<1x128xf32> to vector<2x128xf32>
    %22 = arith.addf %20, %21 : vector<2x128xf32>
    %c0_17 = arith.constant 0 : index
    %c0_18 = arith.constant 0 : index
    %23 = vector.load %arg10[%c0_17, %c0_18] : memref<2x128xf32, #tpu.memory_space<vmem>>, vector<2x128xf32>
    tpu.vector_store %arg10[%c0_17, %c0_18], %22 {strides = array<i32>} : memref<2x128xf32, #tpu.memory_space<vmem>>, vector<2x128xf32>,
    %c0_19 = arith.constant 0 : index
    %c0_20 = arith.constant 0 : index
    %24 = vector.load %arg2[%c0_19, %c0_20] : memref<2x384xf32, #tpu.memory_space<vmem>>, vector<2x384xf32>
    %25 = arith.truncf %24 : vector<2x384xf32> to vector<2x384xbf16>
    %cst_21 = arith.constant dense<0.000000e+00> : vector<2x512xf32>
    %26 = tpu.matmul %25, %0, %cst_21 {dimension_numbers = #tpu.dot_dimension_numbers<[1], [0], [0], [1], [0, 0, 1, 1], [], []>} : vector<2x384xbf16>, vector<384x512xbf16>, vector<2x512xf32> -> vector<2x512xf32>
    %27 = vector.broadcast %1 : vector<1x512xf32> to vector<2x512xf32>
    %28 = arith.addf %26, %27 : vector<2x512xf32>
    %cst_22 = arith.constant 0.000000e+00 : f32
    %29 = vector.broadcast %cst_22 : f32 to vector<2x512xf32>
    %30 = arith.maximumf %28, %29 : vector<2x512xf32>
    %31 = arith.truncf %30 : vector<2x512xf32> to vector<2x512xbf16>
    %cst_23 = arith.constant dense<0.000000e+00> : vector<2x256xf32>
    %32 = tpu.matmul %31, %2, %cst_23 {dimension_numbers = #tpu.dot_dimension_numbers<[1], [0], [0], [1], [0, 0, 1, 1], [], []>} : vector<2x512xbf16>, vector<512x256xbf16>, vector<2x256xf32> -> vector<2x256xf32>
    %33 = vector.broadcast %3 : vector<1x256xf32> to vector<2x256xf32>
    %34 = arith.addf %32, %33 : vector<2x256xf32>
    %cst_24 = arith.constant 0.000000e+00 : f32
    %35 = vector.broadcast %cst_24 : f32 to vector<2x256xf32>
    %36 = arith.maximumf %34, %35 : vector<2x256xf32>
    %37 = arith.truncf %36 : vector<2x256xf32> to vector<2x256xbf16>
    %cst_25 = arith.constant dense<0.000000e+00> : vector<2x128xf32>
    %38 = tpu.matmul %37, %4, %cst_25 {dimension_numbers = #tpu.dot_dimension_numbers<[1], [0], [0], [1], [0, 0, 1, 1], [], []>} : vector<2x256xbf16>, vector<256x128xbf16>, vector<2x128xf32> -> vector<2x128xf32>
    %39 = vector.broadcast %5 : vector<1x128xf32> to vector<2x128xf32>
    %40 = arith.addf %38, %39 : vector<2x128xf32>
    %c0_26 = arith.constant 0 : index
    %c0_27 = arith.constant 0 : index
    %41 = vector.load %arg11[%c0_26, %c0_27] : memref<2x128xf32, #tpu.memory_space<vmem>>, vector<2x128xf32>
    tpu.vector_store %arg11[%c0_26, %c0_27], %40 {strides = array<i32>} : memref<2x128xf32, #tpu.memory_space<vmem>>, vector<2x128xf32>,
    %c0_28 = arith.constant 0 : index
    %c0_29 = arith.constant 0 : index
    %42 = vector.load %arg3[%c0_28, %c0_29] : memref<2x384xf32, #tpu.memory_space<vmem>>, vector<2x384xf32>
    %43 = arith.truncf %42 : vector<2x384xf32> to vector<2x384xbf16>
    %cst_30 = arith.constant dense<0.000000e+00> : vector<2x512xf32>
    %44 = tpu.matmul %43, %0, %cst_30 {dimension_numbers = #tpu.dot_dimension_numbers<[1], [0], [0], [1], [0, 0, 1, 1], [], []>} : vector<2x384xbf16>, vector<384x512xbf16>, vector<2x512xf32> -> vector<2x512xf32>
    %45 = vector.broadcast %1 : vector<1x512xf32> to vector<2x512xf32>
    %46 = arith.addf %44, %45 : vector<2x512xf32>
    %cst_31 = arith.constant 0.000000e+00 : f32
    %47 = vector.broadcast %cst_31 : f32 to vector<2x512xf32>
    %48 = arith.maximumf %46, %47 : vector<2x512xf32>
    %49 = arith.truncf %48 : vector<2x512xf32> to vector<2x512xbf16>
    %cst_32 = arith.constant dense<0.000000e+00> : vector<2x256xf32>
    %50 = tpu.matmul %49, %2, %cst_32 {dimension_numbers = #tpu.dot_dimension_numbers<[1], [0], [0], [1], [0, 0, 1, 1], [], []>} : vector<2x512xbf16>, vector<512x256xbf16>, vector<2x256xf32> -> vector<2x256xf32>
    %51 = vector.broadcast %3 : vector<1x256xf32> to vector<2x256xf32>
    %52 = arith.addf %50, %51 : vector<2x256xf32>
    %cst_33 = arith.constant 0.000000e+00 : f32
    %53 = vector.broadcast %cst_33 : f32 to vector<2x256xf32>
    %54 = arith.maximumf %52, %53 : vector<2x256xf32>
    %55 = arith.truncf %54 : vector<2x256xf32> to vector<2x256xbf16>
    %cst_34 = arith.constant dense<0.000000e+00> : vector<2x128xf32>
    %56 = tpu.matmul %55, %4, %cst_34 {dimension_numbers = #tpu.dot_dimension_numbers<[1], [0], [0], [1], [0, 0, 1, 1], [], []>} : vector<2x256xbf16>, vector<256x128xbf16>, vector<2x128xf32> -> vector<2x128xf32>
    %57 = vector.broadcast %5 : vector<1x128xf32> to vector<2x128xf32>
    %58 = arith.addf %56, %57 : vector<2x128xf32>
    %c0_35 = arith.constant 0 : index
    %c0_36 = arith.constant 0 : index
    %59 = vector.load %arg12[%c0_35, %c0_36] : memref<2x128xf32, #tpu.memory_space<vmem>>, vector<2x128xf32>
    tpu.vector_store %arg12[%c0_35, %c0_36], %58 {strides = array<i32>} : memref<2x128xf32, #tpu.memory_space<vmem>>, vector<2x128xf32>,
    return
  }
  func.func @transform_0(%arg0: i32) -> (i32, i32) {
    %c0_i32 = arith.constant 0 : i32
    %c0_i32_0 = arith.constant 0 : i32
    return %arg0, %c0_i32 : i32, i32
  }
  func.func @transform_1(%arg0: i32) -> (i32, i32) {
    %c0_i32 = arith.constant 0 : i32
    %c0_i32_0 = arith.constant 0 : i32
    return %arg0, %c0_i32 : i32, i32
  }
  func.func @transform_2(%arg0: i32) -> (i32, i32) {
    %c0_i32 = arith.constant 0 : i32
    %c0_i32_0 = arith.constant 0 : i32
    return %arg0, %c0_i32 : i32, i32
  }
  func.func @transform_3(%arg0: i32) -> (i32, i32) {
    %c0_i32 = arith.constant 0 : i32
    %c0_i32_0 = arith.constant 0 : i32
    %c0_i32_1 = arith.constant 0 : i32
    return %c0_i32, %c0_i32_0 : i32, i32
  }
  func.func @transform_4(%arg0: i32) -> (i32, i32) {
    %c0_i32 = arith.constant 0 : i32
    %c0_i32_0 = arith.constant 0 : i32
    %c0_i32_1 = arith.constant 0 : i32
    return %c0_i32, %c0_i32_0 : i32, i32
  }
  func.func @transform_5(%arg0: i32) -> (i32, i32) {
    %c0_i32 = arith.constant 0 : i32
    %c0_i32_0 = arith.constant 0 : i32
    %c0_i32_1 = arith.constant 0 : i32
    return %c0_i32, %c0_i32_0 : i32, i32
  }
  func.func @transform_6(%arg0: i32) -> (i32, i32) {
    %c0_i32 = arith.constant 0 : i32
    %c0_i32_0 = arith.constant 0 : i32
    %c0_i32_1 = arith.constant 0 : i32
    return %c0_i32, %c0_i32_0 : i32, i32
  }
  func.func @transform_7(%arg0: i32) -> (i32, i32) {
    %c0_i32 = arith.constant 0 : i32
    %c0_i32_0 = arith.constant 0 : i32
    %c0_i32_1 = arith.constant 0 : i32
    return %c0_i32, %c0_i32_0 : i32, i32
  }
  func.func @transform_8(%arg0: i32) -> (i32, i32) {
    %c0_i32 = arith.constant 0 : i32
    %c0_i32_0 = arith.constant 0 : i32
    %c0_i32_1 = arith.constant 0 : i32
    return %c0_i32, %c0_i32_0 : i32, i32
  }
  func.func @transform_9(%arg0: i32) -> (i32, i32) {
    %c0_i32 = arith.constant 0 : i32
    %c0_i32_0 = arith.constant 0 : i32
    return %arg0, %c0_i32 : i32, i32
  }
  func.func @transform_10(%arg0: i32) -> (i32, i32) {
    %c0_i32 = arith.constant 0 : i32
    %c0_i32_0 = arith.constant 0 : i32
    return %arg0, %c0_i32 : i32, i32
  }
  func.func @transform_11(%arg0: i32) -> (i32, i32) {
    %c0_i32 = arith.constant 0 : i32
    %c0_i32_0 = arith.constant 0 : i32
    return %arg0, %c0_i32 : i32, i32
  }
}

</mosaic_0001>

<llo_original>
// kernel: siamese_forward.1
$region0: #{siamese_forward.1}
  #allocation0 [shape = 'u32[]', space=smem, size = 0x4, offset = 0x4, fixed_abs, tag = 'smem constant byte address 0x4 - core index']
  #allocation1 [shape = 'u32[144,128]{1,0:T(1,128)}', space=vmem, size = 0x12000, scoped, tag = 'internal scratch']
  %s0 = inlined_call_operand.hbm [shape: f32[2,384], index: 0, kind: input, shape index: {}]
  %s1 = inlined_call_operand.hbm [shape: f32[2,384], index: 1, kind: input, shape index: {}]
  %s2 = inlined_call_operand.vmem [shape: f32[2,384], index: 2, kind: input, shape index: {}]
  %s3 = inlined_call_operand.hbm [shape: bf16[384,512], index: 3, kind: input, shape index: {}]
  %s4 = inlined_call_operand.vmem [shape: f32[1,512], index: 4, kind: input, shape index: {}]
  %s5 = inlined_call_operand.hbm [shape: bf16[512,256], index: 5, kind: input, shape index: {}]
  %s6 = inlined_call_operand.vmem [shape: f32[1,256], index: 6, kind: input, shape index: {}]
  %s7 = inlined_call_operand.hbm [shape: bf16[256,128], index: 7, kind: input, shape index: {}]
  %s8 = inlined_call_operand.vmem [shape: f32[1,128], index: 8, kind: input, shape index: {}]
  %s9 = inlined_call_operand.hbm [shape: f32[2,128], index: 9, kind: output, shape index: {0}]
  %s10 = inlined_call_operand.hbm [shape: f32[2,128], index: 10, kind: output, shape index: {1}]
  %s11 = inlined_call_operand.hbm [shape: f32[2,128], index: 11, kind: output, shape index: {2}]
  %12 = xla_tuple %s9, %s10, %s11
  %s13 = sld [smem:[#allocation0]]
  $region82: #{siamese_forward.1} parent=0
    _
  %s15 = ssub.s32 1, %s13
  %s16 = scalar_select 0, %s15, %s13
  $region1: #{siamese_forward.1} parent=0
    #allocation2 [shape = 'u8[3072]{0}', space=vmem, size = 0xc00, scoped, tag = 'input window, operand 0, single buffered']
    #allocation3 [shape = 's32[1]{0}', space=sflag, size = 0x4, scoped, tag = 'scoped memory for siamese_forward.1']
    #allocation4 [shape = 's32[1]{0}', space=sflag, size = 0x4, scoped, tag = 'scoped memory for siamese_forward.1']
    #allocation5 [shape = 'u8[3072]{0}', space=vmem, size = 0xc00, scoped, tag = 'input window, operand 1, single buffered']
    #allocation6 [shape = 's32[1]{0}', space=sflag, size = 0x4, scoped, tag = 'scoped memory for siamese_forward.1']
    #allocation7 [shape = 'u8[393216]{0}', space=vmem, size = 0x60000, scoped, tag = 'input window, operand 3, single buffered']
    #allocation8 [shape = 'u8[262144]{0}', space=vmem, size = 0x40000, scoped, tag = 'input window, operand 5, single buffered']
    #allocation9 [shape = 's32[1]{0}', space=sflag, size = 0x4, scoped, tag = 'scoped memory for siamese_forward.1']
    #allocation10 [shape = 'u8[65536]{0}', space=vmem, size = 0x10000, scoped, tag = 'input window, operand 7, single buffered']
    #allocation11 [shape = 'u8[1024]{0}', space=vmem, size = 0x400, scoped, tag = 'output window, operand 0, single buffered']
    #allocation12 [shape = 'u8[1024]{0}', space=vmem, size = 0x400, scoped, tag = 'output window, operand 1, single buffered']
    #allocation13 [shape = 's32[1]{0}', space=sflag, size = 0x4, scoped, tag = 'scoped memory for siamese_forward.1']
    #allocation14 [shape = 'u8[1024]{0}', space=vmem, size = 0x400, scoped, tag = 'output window, operand 2, single buffered']
    %17 = vsyncpa [#allocation3], 0
    %18 = vsyncpa [#allocation6], 0
    %19 = vsyncpa [#allocation9], 0
    %20 = vsyncpa [#allocation4], 0
    %21 = vsyncpa [#allocation13], 0
    // Predicated region
    $region2: #{siamese_forward.1} parent=1 // pred_check
      _
    $region3: #{siamese_forward.1} parent=1 // pred_check_branch
      %23 = sbr.rel (0) target = $region5
    $region4: #{siamese_forward.1} parent=1 // pred_region
      %s25 = ssub.s32 96, 96
      %26 = vsyncadd [#allocation3], %s25
      %s28 = sshll.u32 [#allocation2], 4
      %s29 = int_to_ptr.vmem [resolvable:$true] %s28
      %31 = dma.hbm_to_vmem [thread:$0]  %s0, 96, %s29, [#allocation3]
    $region5: #{siamese_forward.1} parent=1 // pred_fallthru
      _
    // Predicated region
    $region6: #{siamese_forward.1} parent=1 // pred_check
      _
    $region7: #{siamese_forward.1} parent=1 // pred_check_branch
      %33 = sbr.rel (0) target = $region9
    $region8: #{siamese_forward.1} parent=1 // pred_region
      %s35 = ssub.s32 96, 96
      %36 = vsyncadd [#allocation6], %s35
      %s38 = sshll.u32 [#allocation5], 4
      %s39 = int_to_ptr.vmem [resolvable:$true] %s38
      %41 = dma.hbm_to_vmem [thread:$0]  %s1, 96, %s39, [#allocation6]
    $region9: #{siamese_forward.1} parent=1 // pred_fallthru
      _
    // Predicated region
    $region10: #{siamese_forward.1} parent=1 // pred_check
      _
    $region11: #{siamese_forward.1} parent=1 // pred_check_branch
      %43 = sbr.rel (0) target = $region13
    $region12: #{siamese_forward.1} parent=1 // pred_region
      _
    $region13: #{siamese_forward.1} parent=1 // pred_fallthru
      _
    // Predicated region
    $region14: #{siamese_forward.1} parent=1 // pred_check
      _
    $region15: #{siamese_forward.1} parent=1 // pred_check_branch
      %45 = sbr.rel (0) target = $region17
    $region16: #{siamese_forward.1} parent=1 // pred_region
      %s47 = ssub.s32 12288, 12288
      %48 = vsyncadd [#allocation6], %s47
      %s49 = sshll.u32 [#allocation7], 4
      %s50 = int_to_ptr.vmem [resolvable:$true] %s49
      %55 = dma.hbm_to_vmem [thread:$0]  %s3, 12288, %s50, [#allocation6], 256, 256, 16
    $region17: #{siamese_forward.1} parent=1 // pred_fallthru
      _
    // Predicated region
    $region18: #{siamese_forward.1} parent=1 // pred_check
      _
    $region19: #{siamese_forward.1} parent=1 // pred_check_branch
      %57 = sbr.rel (0) target = $region21
    $region20: #{siamese_forward.1} parent=1 // pred_region
      _
    $region21: #{siamese_forward.1} parent=1 // pred_fallthru
      _
    // Predicated region
    $region22: #{siamese_forward.1} parent=1 // pred_check
      _
    $region23: #{siamese_forward.1} parent=1 // pred_check_branch
      %59 = sbr.rel (0) target = $region25
    $region24: #{siamese_forward.1} parent=1 // pred_region
      %s61 = ssub.s32 8192, 8192
      %62 = vsyncadd [#allocation9], %s61
      %s63 = sshll.u32 [#allocation8], 4
      %s64 = int_to_ptr.vmem [resolvable:$true] %s63
      %69 = dma.hbm_to_vmem [thread:$0]  %s5, 8192, %s64, [#allocation9], 128, 128, 8
    $region25: #{siamese_forward.1} parent=1 // pred_fallthru
      _
    // Predicated region
    $region26: #{siamese_forward.1} parent=1 // pred_check
      _
    $region27: #{siamese_forward.1} parent=1 // pred_check_branch
      %71 = sbr.rel (0) target = $region29
    $region28: #{siamese_forward.1} parent=1 // pred_region
      _
    $region29: #{siamese_forward.1} parent=1 // pred_fallthru
      _
    // Predicated region
    $region30: #{siamese_forward.1} parent=1 // pred_check
      _
    $region31: #{siamese_forward.1} parent=1 // pred_check_branch
      %73 = sbr.rel (0) target = $region33
    $region32: #{siamese_forward.1} parent=1 // pred_region
      %s75 = ssub.s32 2048, 2048
      %76 = vsyncadd [#allocation9], %s75
      %s77 = sshll.u32 [#allocation10], 4
      %s78 = int_to_ptr.vmem [resolvable:$true] %s77
      %83 = dma.hbm_to_vmem [thread:$0]  %s7, 2048, %s78, [#allocation9], 64, 64, 4
    $region33: #{siamese_forward.1} parent=1 // pred_fallthru
      _
    // Predicated region
    $region34: #{siamese_forward.1} parent=1 // pred_check
      _
    $region35: #{siamese_forward.1} parent=1 // pred_check_branch
      %85 = sbr.rel (0) target = $region37
    $region36: #{siamese_forward.1} parent=1 // pred_region
      _
    $region37: #{siamese_forward.1} parent=1 // pred_fallthru
      _
    // Predicated region
    $region38: #{siamese_forward.1} parent=1 // pred_check
      _
    $region39: #{siamese_forward.1} parent=1 // pred_check_branch
      %87 = sbr.rel (0) target = $region41
    $region40: #{siamese_forward.1} parent=1 // pred_region
      %88 = dma.done [#allocation3], 96
    $region41: #{siamese_forward.1} parent=1 // pred_fallthru
      _
    // Predicated region
    $region42: #{siamese_forward.1} parent=1 // pred_check
      _
    $region43: #{siamese_forward.1} parent=1 // pred_check_branch
      %90 = sbr.rel (0) target = $region45
    $region44: #{siamese_forward.1} parent=1 // pred_region
      %91 = dma.done [#allocation6], 96
    $region45: #{siamese_forward.1} parent=1 // pred_fallthru
      _
    // Predicated region
    $region46: #{siamese_forward.1} parent=1 // pred_check
      _
    $region47: #{siamese_forward.1} parent=1 // pred_check_branch
      %93 = sbr.rel (0) target = $region49
    $region48: #{siamese_forward.1} parent=1 // pred_region
      %94 = dma.done [#allocation6], 12288
    $region49: #{siamese_forward.1} parent=1 // pred_fallthru
      _
    // Predicated region
    $region50: #{siamese_forward.1} parent=1 // pred_check
      _
    $region51: #{siamese_forward.1} parent=1 // pred_check_branch
      %96 = sbr.rel (0) target = $region53
    $region52: #{siamese_forward.1} parent=1 // pred_region
      %97 = dma.done [#allocation9], 8192
    $region53: #{siamese_forward.1} parent=1 // pred_fallthru
      _
    // Predicated region
    $region54: #{siamese_forward.1} parent=1 // pred_check
      _
    $region55: #{siamese_forward.1} parent=1 // pred_check_branch
      %99 = sbr.rel (0) target = $region57
    $region56: #{siamese_forward.1} parent=1 // pred_region
      %100 = dma.done [#allocation9], 2048
    $region57: #{siamese_forward.1} parent=1 // pred_fallthru
      _
    %v102 = vld [vmem:[#allocation7] sm:$0xff]
    %v103 = vld [vmem:[#allocation7 + $0x8] sm:$0xff]
    %v104 = vld [vmem:[#allocation7 + $0x10] sm:$0xff]
    %v105 = vld [vmem:[#allocation7 + $0x18] sm:$0xff]
    %v106 = vld [vmem:[#allocation7 + $0x20] sm:$0xff]
    %v107 = vld [vmem:[#allocation7 + $0x28] sm:$0xff]
    %v108 = vld [vmem:[#allocation7 + $0x30] sm:$0xff]
    %v109 = vld [vmem:[#allocation7 + $0x38] sm:$0xff]
    %v110 = vld [vmem:[#allocation7 + $0x40] sm:$0xff]
    %v111 = vld [vmem:[#allocation7 + $0x48] sm:$0xff]
    %v112 = vld [vmem:[#allocation7 + $0x50] sm:$0xff]
    %v113 = vld [vmem:[#allocation7 + $0x58] sm:$0xff]
    %v114 = vld [vmem:[#allocation7 + $0x60] sm:$0xff]
    %v115 = vld [vmem:[#allocation7 + $0x68] sm:$0xff]
    %v116 = vld [vmem:[#allocation7 + $0x70] sm:$0xff]
    %v117 = vld [vmem:[#allocation7 + $0x78] sm:$0xff]
    %v118 = vld [vmem:[#allocation7 + $0x80] sm:$0xff]
    %v119 = vld [vmem:[#allocation7 + $0x88] sm:$0xff]
    %v120 = vld [vmem:[#allocation7 + $0x90] sm:$0xff]
    %v121 = vld [vmem:[#allocation7 + $0x98] sm:$0xff]
    %v122 = vld [vmem:[#allocation7 + $0xa0] sm:$0xff]
    %v123 = vld [vmem:[#allocation7 + $0xa8] sm:$0xff]
    %v124 = vld [vmem:[#allocation7 + $0xb0] sm:$0xff]
    %v125 = vld [vmem:[#allocation7 + $0xb8] sm:$0xff]
    %v126 = vld [vmem:[#allocation7 + $0xc0] sm:$0xff]
    %v127 = vld [vmem:[#allocation7 + $0xc8] sm:$0xff]
    %v128 = vld [vmem:[#allocation7 + $0xd0] sm:$0xff]
    %v129 = vld [vmem:[#allocation7 + $0xd8] sm:$0xff]
    %v130 = vld [vmem:[#allocation7 + $0xe0] sm:$0xff]
    %v131 = vld [vmem:[#allocation7 + $0xe8] sm:$0xff]
    %v132 = vld [vmem:[#allocation7 + $0xf0] sm:$0xff]
    %v133 = vld [vmem:[#allocation7 + $0xf8] sm:$0xff]
    %v134 = vld [vmem:[#allocation7 + $0x100] sm:$0xff]
    %v135 = vld [vmem:[#allocation7 + $0x108] sm:$0xff]
    %v136 = vld [vmem:[#allocation7 + $0x110] sm:$0xff]
    %v137 = vld [vmem:[#allocation7 + $0x118] sm:$0xff]
    %v138 = vld [vmem:[#allocation7 + $0x120] sm:$0xff]
    %v139 = vld [vmem:[#allocation7 + $0x128] sm:$0xff]
    %v140 = vld [vmem:[#allocation7 + $0x130] sm:$0xff]
    %v141 = vld [vmem:[#allocation7 + $0x138] sm:$0xff]
    %v142 = vld [vmem:[#allocation7 + $0x140] sm:$0xff]
    %v143 = vld [vmem:[#allocation7 + $0x148] sm:$0xff]
    %v144 = vld [vmem:[#allocation7 + $0x150] sm:$0xff]
    %v145 = vld [vmem:[#allocation7 + $0x158] sm:$0xff]
    %v146 = vld [vmem:[#allocation7 + $0x160] sm:$0xff]
    %v147 = vld [vmem:[#allocation7 + $0x168] sm:$0xff]
    %v148 = vld [vmem:[#allocation7 + $0x170] sm:$0xff]
    %v149 = vld [vmem:[#allocation7 + $0x178] sm:$0xff]
    %v150 = vld [vmem:[#allocation7 + $0x180] sm:$0xff]
    %v151 = vld [vmem:[#allocation7 + $0x188] sm:$0xff]
    %v152 = vld [vmem:[#allocation7 + $0x190] sm:$0xff]
    %v153 = vld [vmem:[#allocation7 + $0x198] sm:$0xff]
    %v154 = vld [vmem:[#allocation7 + $0x1a0] sm:$0xff]
    %v155 = vld [vmem:[#allocation7 + $0x1a8] sm:$0xff]
    %v156 = vld [vmem:[#allocation7 + $0x1b0] sm:$0xff]
    %v157 = vld [vmem:[#allocation7 + $0x1b8] sm:$0xff]
    %v158 = vld [vmem:[#allocation7 + $0x1c0] sm:$0xff]
    %v159 = vld [vmem:[#allocation7 + $0x1c8] sm:$0xff]
    %v160 = vld [vmem:[#allocation7 + $0x1d0] sm:$0xff]
    %v161 = vld [vmem:[#allocation7 + $0x1d8] sm:$0xff]
    %v162 = vld [vmem:[#allocation7 + $0x1e0] sm:$0xff]
    %v163 = vld [vmem:[#allocation7 + $0x1e8] sm:$0xff]
    %v164 = vld [vmem:[#allocation7 + $0x1f0] sm:$0xff]
    %v165 = vld [vmem:[#allocation7 + $0x1f8] sm:$0xff]
    %v166 = vld [vmem:[#allocation7 + $0x200] sm:$0xff]
    %v167 = vld [vmem:[#allocation7 + $0x208] sm:$0xff]
    %v168 = vld [vmem:[#allocation7 + $0x210] sm:$0xff]
    %v169 = vld [vmem:[#allocation7 + $0x218] sm:$0xff]
    %v170 = vld [vmem:[#allocation7 + $0x220] sm:$0xff]
    %v171 = vld [vmem:[#allocation7 + $0x228] sm:$0xff]
    %v172 = vld [vmem:[#allocation7 + $0x230] sm:$0xff]
    %v173 = vld [vmem:[#allocation7 + $0x238] sm:$0xff]
    %v174 = vld [vmem:[#allocation7 + $0x240] sm:$0xff]
    %v175 = vld [vmem:[#allocation7 + $0x248] sm:$0xff]
    %v176 = vld [vmem:[#allocation7 + $0x250] sm:$0xff]
    %v177 = vld [vmem:[#allocation7 + $0x258] sm:$0xff]
    %v178 = vld [vmem:[#allocation7 + $0x260] sm:$0xff]
    %v179 = vld [vmem:[#allocation7 + $0x268] sm:$0xff]
    %v180 = vld [vmem:[#allocation7 + $0x270] sm:$0xff]
    %v181 = vld [vmem:[#allocation7 + $0x278] sm:$0xff]
    %v182 = vld [vmem:[#allocation7 + $0x280] sm:$0xff]
    %v183 = vld [vmem:[#allocation7 + $0x288] sm:$0xff]
    %v184 = vld [vmem:[#allocation7 + $0x290] sm:$0xff]
    %v185 = vld [vmem:[#allocation7 + $0x298] sm:$0xff]
    %v186 = vld [vmem:[#allocation7 + $0x2a0] sm:$0xff]
    %v187 = vld [vmem:[#allocation7 + $0x2a8] sm:$0xff]
    %v188 = vld [vmem:[#allocation7 + $0x2b0] sm:$0xff]
    %v189 = vld [vmem:[#allocation7 + $0x2b8] sm:$0xff]
    %v190 = vld [vmem:[#allocation7 + $0x2c0] sm:$0xff]
    %v191 = vld [vmem:[#allocation7 + $0x2c8] sm:$0xff]
    %v192 = vld [vmem:[#allocation7 + $0x2d0] sm:$0xff]
    %v193 = vld [vmem:[#allocation7 + $0x2d8] sm:$0xff]
    %v194 = vld [vmem:[#allocation7 + $0x2e0] sm:$0xff]
    %v195 = vld [vmem:[#allocation7 + $0x2e8] sm:$0xff]
    %v196 = vld [vmem:[#allocation7 + $0x2f0] sm:$0xff]
    %v197 = vld [vmem:[#allocation7 + $0x2f8] sm:$0xff]
    %v198 = vld [vmem:[%s4] sm:$0xf]
    %v199 = vld [vmem:[#allocation8] sm:$0xff]
    %v200 = vld [vmem:[#allocation8 + $0x8] sm:$0xff]
    %v201 = vld [vmem:[#allocation8 + $0x10] sm:$0xff]
    %v202 = vld [vmem:[#allocation8 + $0x18] sm:$0xff]
    %v203 = vld [vmem:[#allocation8 + $0x20] sm:$0xff]
    %v204 = vld [vmem:[#allocation8 + $0x28] sm:$0xff]
    %v205 = vld [vmem:[#allocation8 + $0x30] sm:$0xff]
    %v206 = vld [vmem:[#allocation8 + $0x38] sm:$0xff]
    %v207 = vld [vmem:[#allocation8 + $0x40] sm:$0xff]
    %v208 = vld [vmem:[#allocation8 + $0x48] sm:$0xff]
    %v209 = vld [vmem:[#allocation8 + $0x50] sm:$0xff]
    %v210 = vld [vmem:[#allocation8 + $0x58] sm:$0xff]
    %v211 = vld [vmem:[#allocation8 + $0x60] sm:$0xff]
    %v212 = vld [vmem:[#allocation8 + $0x68] sm:$0xff]
    %v213 = vld [vmem:[#allocation8 + $0x70] sm:$0xff]
    %v214 = vld [vmem:[#allocation8 + $0x78] sm:$0xff]
    %v215 = vld [vmem:[#allocation8 + $0x80] sm:$0xff]
    %v216 = vld [vmem:[#allocation8 + $0x88] sm:$0xff]
    %v217 = vld [vmem:[#allocation8 + $0x90] sm:$0xff]
    %v218 = vld [vmem:[#allocation8 + $0x98] sm:$0xff]
    %v219 = vld [vmem:[#allocation8 + $0xa0] sm:$0xff]
    %v220 = vld [vmem:[#allocation8 + $0xa8] sm:$0xff]
    %v221 = vld [vmem:[#allocation8 + $0xb0] sm:$0xff]
    %v222 = vld [vmem:[#allocation8 + $0xb8] sm:$0xff]
    %v223 = vld [vmem:[#allocation8 + $0xc0] sm:$0xff]
    %v224 = vld [vmem:[#allocation8 + $0xc8] sm:$0xff]
    %v225 = vld [vmem:[#allocation8 + $0xd0] sm:$0xff]
    %v226 = vld [vmem:[#allocation8 + $0xd8] sm:$0xff]
    %v227 = vld [vmem:[#allocation8 + $0xe0] sm:$0xff]
    %v228 = vld [vmem:[#allocation8 + $0xe8] sm:$0xff]
    %v229 = vld [vmem:[#allocation8 + $0xf0] sm:$0xff]
    %v230 = vld [vmem:[#allocation8 + $0xf8] sm:$0xff]
    %v231 = vld [vmem:[#allocation8 + $0x100] sm:$0xff]
    %v232 = vld [vmem:[#allocation8 + $0x108] sm:$0xff]
    %v233 = vld [vmem:[#allocation8 + $0x110] sm:$0xff]
    %v234 = vld [vmem:[#allocation8 + $0x118] sm:$0xff]
    %v235 = vld [vmem:[#allocation8 + $0x120] sm:$0xff]
    %v236 = vld [vmem:[#allocation8 + $0x128] sm:$0xff]
    %v237 = vld [vmem:[#allocation8 + $0x130] sm:$0xff]
    %v238 = vld [vmem:[#allocation8 + $0x138] sm:$0xff]
    %v239 = vld [vmem:[#allocation8 + $0x140] sm:$0xff]
    %v240 = vld [vmem:[#allocation8 + $0x148] sm:$0xff]
    %v241 = vld [vmem:[#allocation8 + $0x150] sm:$0xff]
    %v242 = vld [vmem:[#allocation8 + $0x158] sm:$0xff]
    %v243 = vld [vmem:[#allocation8 + $0x160] sm:$0xff]
    %v244 = vld [vmem:[#allocation8 + $0x168] sm:$0xff]
    %v245 = vld [vmem:[#allocation8 + $0x170] sm:$0xff]
    %v246 = vld [vmem:[#allocation8 + $0x178] sm:$0xff]
    %v247 = vld [vmem:[#allocation8 + $0x180] sm:$0xff]
    %v248 = vld [vmem:[#allocation8 + $0x188] sm:$0xff]
    %v249 = vld [vmem:[#allocation8 + $0x190] sm:$0xff]
    %v250 = vld [vmem:[#allocation8 + $0x198] sm:$0xff]
    %v251 = vld [vmem:[#allocation8 + $0x1a0] sm:$0xff]
    %v252 = vld [vmem:[#allocation8 + $0x1a8] sm:$0xff]
    %v253 = vld [vmem:[#allocation8 + $0x1b0] sm:$0xff]
    %v254 = vld [vmem:[#allocation8 + $0x1b8] sm:$0xff]
    %v255 = vld [vmem:[#allocation8 + $0x1c0] sm:$0xff]
    %v256 = vld [vmem:[#allocation8 + $0x1c8] sm:$0xff]
    %v257 = vld [vmem:[#allocation8 + $0x1d0] sm:$0xff]
    %v258 = vld [vmem:[#allocation8 + $0x1d8] sm:$0xff]
    %v259 = vld [vmem:[#allocation8 + $0x1e0] sm:$0xff]
    %v260 = vld [vmem:[#allocation8 + $0x1e8] sm:$0xff]
    %v261 = vld [vmem:[#allocation8 + $0x1f0] sm:$0xff]
    %v262 = vld [vmem:[#allocation8 + $0x1f8] sm:$0xff]
    %v263 = vld [vmem:[%s6] sm:$0x3]
    %v264 = vld [vmem:[#allocation10] sm:$0xf]
    %v265 = vld [vmem:[#allocation10 + $0x4] sm:$0xf]
    %v266 = vld [vmem:[#allocation10 + $0x8] sm:$0xf]
    %v267 = vld [vmem:[#allocation10 + $0xc] sm:$0xf]
    %v268 = vld [vmem:[#allocation10 + $0x10] sm:$0xf]
    %v269 = vld [vmem:[#allocation10 + $0x14] sm:$0xf]
    %v270 = vld [vmem:[#allocation10 + $0x18] sm:$0xf]
    %v271 = vld [vmem:[#allocation10 + $0x1c] sm:$0xf]
    %v272 = vld [vmem:[#allocation10 + $0x20] sm:$0xf]
    %v273 = vld [vmem:[#allocation10 + $0x24] sm:$0xf]
    %v274 = vld [vmem:[#allocation10 + $0x28] sm:$0xf]
    %v275 = vld [vmem:[#allocation10 + $0x2c] sm:$0xf]
    %v276 = vld [vmem:[#allocation10 + $0x30] sm:$0xf]
    %v277 = vld [vmem:[#allocation10 + $0x34] sm:$0xf]
    %v278 = vld [vmem:[#allocation10 + $0x38] sm:$0xf]
    %v279 = vld [vmem:[#allocation10 + $0x3c] sm:$0xf]
    %v280 = vld [vmem:[#allocation10 + $0x40] sm:$0xf]
    %v281 = vld [vmem:[#allocation10 + $0x44] sm:$0xf]
    %v282 = vld [vmem:[#allocation10 + $0x48] sm:$0xf]
    %v283 = vld [vmem:[#allocation10 + $0x4c] sm:$0xf]
    %v284 = vld [vmem:[#allocation10 + $0x50] sm:$0xf]
    %v285 = vld [vmem:[#allocation10 + $0x54] sm:$0xf]
    %v286 = vld [vmem:[#allocation10 + $0x58] sm:$0xf]
    %v287 = vld [vmem:[#allocation10 + $0x5c] sm:$0xf]
    %v288 = vld [vmem:[#allocation10 + $0x60] sm:$0xf]
    %v289 = vld [vmem:[#allocation10 + $0x64] sm:$0xf]
    %v290 = vld [vmem:[#allocation10 + $0x68] sm:$0xf]
    %v291 = vld [vmem:[#allocation10 + $0x6c] sm:$0xf]
    %v292 = vld [vmem:[#allocation10 + $0x70] sm:$0xf]
    %v293 = vld [vmem:[#allocation10 + $0x74] sm:$0xf]
    %v294 = vld [vmem:[#allocation10 + $0x78] sm:$0xf]
    %v295 = vld [vmem:[#allocation10 + $0x7c] sm:$0xf]
    %v296 = vld [vmem:[%s8] sm:$0x1]
    %v297 = vld [vmem:[#allocation2] sm:$0x3f]
    %v299 = vcombine.high %v297, %v297
    %v301 = vunpack.c.l.s4 1983009808
    %v302 = vunpack.c.0.s8 %v301
    %v303 = vlaneseq
    %v304 = vshrl.u32 %v303, 7
    %v305 = vsub.s32 %v302, %v304
    %v306 = vrot.slane %v297, %v305
    %v308 = vunpack.c.l.s4 1983009808
    %v309 = vunpack.c.0.s8 %v308
    %v310 = vlaneseq
    %v311 = vshrl.u32 %v310, 7
    %v312 = vsub.s32 %v309, %v311
    %v313 = vrot.slane %v299, %v312
    %v314 = vcombine.high %v306, %v306
    %v318 = vpack.c.bf16 %v306, %v306
    %v319 = vpack.c.bf16 %v314, %v314
    %v320 = vpack.c.bf16 %v313, %v313
    %v322 = vlaneseq
    %v323 = vshrl.u32 %v322, 7
    %v324 = vsub.s32 0, %v323
    %v325 = vrot.slane %v198, %v324
    %v326 = vlaneseq
    %v327 = vshrl.u32 %v326, 7
    %v328 = vsub.s32 1, %v327
    %v329 = vrot.slane %v198, %v328
    %v330 = vlaneseq
    %v331 = vshrl.u32 %v330, 7
    %v332 = vsub.s32 2, %v331
    %v333 = vrot.slane %v198, %v332
    %v334 = vlaneseq
    %v335 = vshrl.u32 %v334, 7
    %v336 = vsub.s32 3, %v335
    %v337 = vrot.slane %v198, %v336
    %v438 = vunpack.c.l.b16 %v102
    %v439 = vunpack.c.h.b16 %v102
    %v440 = vunpack.c.l.b16 %v103
    %v441 = vunpack.c.h.b16 %v103
    %v442 = vunpack.c.l.b16 %v104
    %v443 = vunpack.c.h.b16 %v104
    %v444 = vunpack.c.l.b16 %v105
    %v445 = vunpack.c.h.b16 %v105
    %v446 = vunpack.c.l.b16 %v106
    %v447 = vunpack.c.h.b16 %v106
    %v448 = vunpack.c.l.b16 %v107
    %v449 = vunpack.c.h.b16 %v107
    %v450 = vunpack.c.l.b16 %v108
    %v451 = vunpack.c.h.b16 %v108
    %v452 = vunpack.c.l.b16 %v109
    %v453 = vunpack.c.h.b16 %v109
    %v454 = vunpack.c.l.b16 %v110
    %v455 = vunpack.c.h.b16 %v110
    %v456 = vunpack.c.l.b16 %v111
    %v457 = vunpack.c.h.b16 %v111
    %v458 = vunpack.c.l.b16 %v112
    %v459 = vunpack.c.h.b16 %v112
    %v460 = vunpack.c.l.b16 %v113
    %v461 = vunpack.c.h.b16 %v113
    %v462 = vunpack.c.l.b16 %v114
    %v463 = vunpack.c.h.b16 %v114
    %v464 = vunpack.c.l.b16 %v115
    %v465 = vunpack.c.h.b16 %v115
    %v466 = vunpack.c.l.b16 %v116
    %v467 = vunpack.c.h.b16 %v116
    %v468 = vunpack.c.l.b16 %v117
    %v469 = vunpack.c.h.b16 %v117
    %v470 = vunpack.c.l.b16 %v118
    %v471 = vunpack.c.h.b16 %v118
    %v472 = vunpack.c.l.b16 %v119
    %v473 = vunpack.c.h.b16 %v119
    %v474 = vunpack.c.l.b16 %v120
    %v475 = vunpack.c.h.b16 %v120
    %v476 = vunpack.c.l.b16 %v121
    %v477 = vunpack.c.h.b16 %v121
    %v478 = vunpack.c.l.b16 %v122
    %v479 = vunpack.c.h.b16 %v122
    %v480 = vunpack.c.l.b16 %v123
    %v481 = vunpack.c.h.b16 %v123
    %v482 = vunpack.c.l.b16 %v124
    %v483 = vunpack.c.h.b16 %v124
    %v484 = vunpack.c.l.b16 %v125
    %v485 = vunpack.c.h.b16 %v125
    %v486 = vunpack.c.l.b16 %v126
    %v487 = vunpack.c.h.b16 %v126
    %v488 = vunpack.c.l.b16 %v127
    %v489 = vunpack.c.h.b16 %v127
    %v490 = vunpack.c.l.b16 %v128
    %v491 = vunpack.c.h.b16 %v128
    %v492 = vunpack.c.l.b16 %v129
    %v493 = vunpack.c.h.b16 %v129
    %v494 = vunpack.c.l.b16 %v130
    %v495 = vunpack.c.h.b16 %v130
    %v496 = vunpack.c.l.b16 %v131
    %v497 = vunpack.c.h.b16 %v131
    %v498 = vunpack.c.l.b16 %v132
    %v499 = vunpack.c.h.b16 %v132
    %v500 = vunpack.c.l.b16 %v133
    %v501 = vunpack.c.h.b16 %v133
    %v502 = vunpack.c.l.b16 %v134
    %v503 = vunpack.c.h.b16 %v134
    %v504 = vunpack.c.l.b16 %v135
    %v505 = vunpack.c.h.b16 %v135
    %v506 = vunpack.c.l.b16 %v136
    %v507 = vunpack.c.h.b16 %v136
    %v508 = vunpack.c.l.b16 %v137
    %v509 = vunpack.c.h.b16 %v137
    %v510 = vunpack.c.l.b16 %v138
    %v511 = vunpack.c.h.b16 %v138
    %v512 = vunpack.c.l.b16 %v139
    %v513 = vunpack.c.h.b16 %v139
    %v514 = vunpack.c.l.b16 %v140
    %v515 = vunpack.c.h.b16 %v140
    %v516 = vunpack.c.l.b16 %v141
    %v517 = vunpack.c.h.b16 %v141
    %v518 = vunpack.c.l.b16 %v142
    %v519 = vunpack.c.h.b16 %v142
    %v520 = vunpack.c.l.b16 %v143
    %v521 = vunpack.c.h.b16 %v143
    %v522 = vunpack.c.l.b16 %v144
    %v523 = vunpack.c.h.b16 %v144
    %v524 = vunpack.c.l.b16 %v145
    %v525 = vunpack.c.h.b16 %v145
    %v526 = vunpack.c.l.b16 %v146
    %v527 = vunpack.c.h.b16 %v146
    %v528 = vunpack.c.l.b16 %v147
    %v529 = vunpack.c.h.b16 %v147
    %v530 = vunpack.c.l.b16 %v148
    %v531 = vunpack.c.h.b16 %v148
    %v532 = vunpack.c.l.b16 %v149
    %v533 = vunpack.c.h.b16 %v149
    %v534 = vunpack.c.l.b16 %v150
    %v535 = vunpack.c.h.b16 %v150
    %v536 = vunpack.c.l.b16 %v151
    %v537 = vunpack.c.h.b16 %v151
    %v538 = vunpack.c.l.b16 %v152
    %v539 = vunpack.c.h.b16 %v152
    %v540 = vunpack.c.l.b16 %v153
    %v541 = vunpack.c.h.b16 %v153
    %v542 = vunpack.c.l.b16 %v154
    %v543 = vunpack.c.h.b16 %v154
    %v544 = vunpack.c.l.b16 %v155
    %v545 = vunpack.c.h.b16 %v155
    %v546 = vunpack.c.l.b16 %v156
    %v547 = vunpack.c.h.b16 %v156
    %v548 = vunpack.c.l.b16 %v157
    %v549 = vunpack.c.h.b16 %v157
    %v550 = vunpack.c.l.b16 %v158
    %v551 = vunpack.c.h.b16 %v158
    %v552 = vunpack.c.l.b16 %v159
    %v553 = vunpack.c.h.b16 %v159
    %v554 = vunpack.c.l.b16 %v160
    %v555 = vunpack.c.h.b16 %v160
    %v556 = vunpack.c.l.b16 %v161
    %v557 = vunpack.c.h.b16 %v161
    %v558 = vunpack.c.l.b16 %v162
    %v559 = vunpack.c.h.b16 %v162
    %v560 = vunpack.c.l.b16 %v163
    %v561 = vunpack.c.h.b16 %v163
    %v562 = vunpack.c.l.b16 %v164
    %v563 = vunpack.c.h.b16 %v164
    %v564 = vunpack.c.l.b16 %v165
    %v565 = vunpack.c.h.b16 %v165
    %v566 = vunpack.c.l.b16 %v166
    %v567 = vunpack.c.h.b16 %v166
    %v568 = vunpack.c.l.b16 %v167
    %v569 = vunpack.c.h.b16 %v167
    %v570 = vunpack.c.l.b16 %v168
    %v571 = vunpack.c.h.b16 %v168
    %v572 = vunpack.c.l.b16 %v169
    %v573 = vunpack.c.h.b16 %v169
    %v574 = vunpack.c.l.b16 %v170
    %v575 = vunpack.c.h.b16 %v170
    %v576 = vunpack.c.l.b16 %v171
    %v577 = vunpack.c.h.b16 %v171
    %v578 = vunpack.c.l.b16 %v172
    %v579 = vunpack.c.h.b16 %v172
    %v580 = vunpack.c.l.b16 %v173
    %v581 = vunpack.c.h.b16 %v173
    %v582 = vunpack.c.l.b16 %v174
    %v583 = vunpack.c.h.b16 %v174
    %v584 = vunpack.c.l.b16 %v175
    %v585 = vunpack.c.h.b16 %v175
    %v586 = vunpack.c.l.b16 %v176
    %v587 = vunpack.c.h.b16 %v176
    %v588 = vunpack.c.l.b16 %v177
    %v589 = vunpack.c.h.b16 %v177
    %v590 = vunpack.c.l.b16 %v178
    %v591 = vunpack.c.h.b16 %v178
    %v592 = vunpack.c.l.b16 %v179
    %v593 = vunpack.c.h.b16 %v179
    %v594 = vunpack.c.l.b16 %v180
    %v595 = vunpack.c.h.b16 %v180
    %v596 = vunpack.c.l.b16 %v181
    %v597 = vunpack.c.h.b16 %v181
    %v598 = vunpack.c.l.b16 %v182
    %v599 = vunpack.c.h.b16 %v182
    %v600 = vunpack.c.l.b16 %v183
    %v601 = vunpack.c.h.b16 %v183
    %v602 = vunpack.c.l.b16 %v184
    %v603 = vunpack.c.h.b16 %v184
    %v604 = vunpack.c.l.b16 %v185
    %v605 = vunpack.c.h.b16 %v185
    %v606 = vunpack.c.l.b16 %v186
    %v607 = vunpack.c.h.b16 %v186
    %v608 = vunpack.c.l.b16 %v187
    %v609 = vunpack.c.h.b16 %v187
    %v610 = vunpack.c.l.b16 %v188
    %v611 = vunpack.c.h.b16 %v188
    %v612 = vunpack.c.l.b16 %v189
    %v613 = vunpack.c.h.b16 %v189
    %v614 = vunpack.c.l.b16 %v190
    %v615 = vunpack.c.h.b16 %v190
    %v616 = vunpack.c.l.b16 %v191
    %v617 = vunpack.c.h.b16 %v191
    %v618 = vunpack.c.l.b16 %v192
    %v619 = vunpack.c.h.b16 %v192
    %v620 = vunpack.c.l.b16 %v193
    %v621 = vunpack.c.h.b16 %v193
    %v622 = vunpack.c.l.b16 %v194
    %v623 = vunpack.c.h.b16 %v194
    %v624 = vunpack.c.l.b16 %v195
    %v625 = vunpack.c.h.b16 %v195
    %v626 = vunpack.c.l.b16 %v196
    %v627 = vunpack.c.h.b16 %v196
    %v628 = vunpack.c.l.b16 %v197
    %v629 = vunpack.c.h.b16 %v197
    %v630 = vpack.c.b16 %v442, %v438
    %v631 = vpack.c.b16 %v443, %v439
    %v632 = vpack.c.b16 %v444, %v440
    %v633 = vpack.c.b16 %v445, %v441
    %v634 = vpack.c.b16 %v450, %v446
    %v635 = vpack.c.b16 %v451, %v447
    %v636 = vpack.c.b16 %v452, %v448
    %v637 = vpack.c.b16 %v453, %v449
    %v638 = vpack.c.b16 %v458, %v454
    %v639 = vpack.c.b16 %v459, %v455
    %v640 = vpack.c.b16 %v460, %v456
    %v641 = vpack.c.b16 %v461, %v457
    %v642 = vpack.c.b16 %v466, %v462
    %v643 = vpack.c.b16 %v467, %v463
    %v644 = vpack.c.b16 %v468, %v464
    %v645 = vpack.c.b16 %v469, %v465
    %v646 = vpack.c.b16 %v474, %v470
    %v647 = vpack.c.b16 %v475, %v471
    %v648 = vpack.c.b16 %v476, %v472
    %v649 = vpack.c.b16 %v477, %v473
    %v650 = vpack.c.b16 %v482, %v478
    %v651 = vpack.c.b16 %v483, %v479
    %v652 = vpack.c.b16 %v484, %v480
    %v653 = vpack.c.b16 %v485, %v481
    %v654 = vpack.c.b16 %v490, %v486
    %v655 = vpack.c.b16 %v491, %v487
    %v656 = vpack.c.b16 %v492, %v488
    %v657 = vpack.c.b16 %v493, %v489
    %v658 = vpack.c.b16 %v498, %v494
    %v659 = vpack.c.b16 %v499, %v495
    %v660 = vpack.c.b16 %v500, %v496
    %v661 = vpack.c.b16 %v501, %v497
    %v662 = vpack.c.b16 %v506, %v502
    %v663 = vpack.c.b16 %v507, %v503
    %v664 = vpack.c.b16 %v508, %v504
    %v665 = vpack.c.b16 %v509, %v505
    %v666 = vpack.c.b16 %v514, %v510
    %v667 = vpack.c.b16 %v515, %v511
    %v668 = vpack.c.b16 %v516, %v512
    %v669 = vpack.c.b16 %v517, %v513
    %v670 = vpack.c.b16 %v522, %v518
    %v671 = vpack.c.b16 %v523, %v519
    %v672 = vpack.c.b16 %v524, %v520
    %v673 = vpack.c.b16 %v525, %v521
    %v674 = vpack.c.b16 %v530, %v526
    %v675 = vpack.c.b16 %v531, %v527
    %v676 = vpack.c.b16 %v532, %v528
    %v677 = vpack.c.b16 %v533, %v529
    %v678 = vpack.c.b16 %v538, %v534
    %v679 = vpack.c.b16 %v539, %v535
    %v680 = vpack.c.b16 %v540, %v536
    %v681 = vpack.c.b16 %v541, %v537
    %v682 = vpack.c.b16 %v546, %v542
    %v683 = vpack.c.b16 %v547, %v543
    %v684 = vpack.c.b16 %v548, %v544
    %v685 = vpack.c.b16 %v549, %v545
    %v686 = vpack.c.b16 %v554, %v550
    %v687 = vpack.c.b16 %v555, %v551
    %v688 = vpack.c.b16 %v556, %v552
    %v689 = vpack.c.b16 %v557, %v553
    %v690 = vpack.c.b16 %v562, %v558
    %v691 = vpack.c.b16 %v563, %v559
    %v692 = vpack.c.b16 %v564, %v560
    %v693 = vpack.c.b16 %v565, %v561
    %v694 = vpack.c.b16 %v570, %v566
    %v695 = vpack.c.b16 %v571, %v567
    %v696 = vpack.c.b16 %v572, %v568
    %v697 = vpack.c.b16 %v573, %v569
    %v698 = vpack.c.b16 %v578, %v574
    %v699 = vpack.c.b16 %v579, %v575
    %v700 = vpack.c.b16 %v580, %v576
    %v701 = vpack.c.b16 %v581, %v577
    %v702 = vpack.c.b16 %v586, %v582
    %v703 = vpack.c.b16 %v587, %v583
    %v704 = vpack.c.b16 %v588, %v584
    %v705 = vpack.c.b16 %v589, %v585
    %v706 = vpack.c.b16 %v594, %v590
    %v707 = vpack.c.b16 %v595, %v591
    %v708 = vpack.c.b16 %v596, %v592
    %v709 = vpack.c.b16 %v597, %v593
    %v710 = vpack.c.b16 %v602, %v598
    %v711 = vpack.c.b16 %v603, %v599
    %v712 = vpack.c.b16 %v604, %v600
    %v713 = vpack.c.b16 %v605, %v601
    %v714 = vpack.c.b16 %v610, %v606
    %v715 = vpack.c.b16 %v611, %v607
    %v716 = vpack.c.b16 %v612, %v608
    %v717 = vpack.c.b16 %v613, %v609
    %v718 = vpack.c.b16 %v618, %v614
    %v719 = vpack.c.b16 %v619, %v615
    %v720 = vpack.c.b16 %v620, %v616
    %v721 = vpack.c.b16 %v621, %v617
    %v722 = vpack.c.b16 %v626, %v622
    %v723 = vpack.c.b16 %v627, %v623
    %v724 = vpack.c.b16 %v628, %v624
    %v725 = vpack.c.b16 %v629, %v625
    %822 = vmatprep.subr.bf16.mxu0 %v631
    %823 = vmatpush1.bf16.msra.mxu0 %v630
    %824 = vmatprep.subr.bf16.mxu0 %v635
    %825 = vmatpush1.bf16.msra.mxu0 %v634
    %826 = vmatprep.subr.bf16.mxu0 %v639
    %827 = vmatpush1.bf16.msra.mxu0 %v638
    %828 = vmatprep.subr.bf16.mxu0 %v643
    %829 = vmatpush1.bf16.msra.mxu0 %v642
    %830 = vmatprep.subr.bf16.mxu0 %v647
    %831 = vmatpush1.bf16.msra.mxu0 %v646
    %832 = vmatprep.subr.bf16.mxu0 %v651
    %833 = vmatpush1.bf16.msra.mxu0 %v650
    %834 = vmatprep.subr.bf16.mxu0 %v655
    %835 = vmatpush1.bf16.msra.mxu0 %v654
    %836 = vmatprep.subr.bf16.mxu0 %v659
    %837 = vmatpush1.bf16.msra.mxu0 %v658
    %838 = vmatprep.subr.bf16.mxu0 %v663
    %839 = vmatpush1.bf16.msra.mxu0 %v662
    %840 = vmatprep.subr.bf16.mxu0 %v667
    %841 = vmatpush1.bf16.msra.mxu0 %v666
    %842 = vmatprep.subr.bf16.mxu0 %v671
    %843 = vmatpush1.bf16.msra.mxu0 %v670
    %844 = vmatprep.subr.bf16.mxu0 %v675
    %845 = vmatpush1.bf16.msra.mxu0 %v674
    %846 = vmatprep.subr.bf16.mxu0 %v679
    %847 = vmatpush1.bf16.msra.mxu0 %v678
    %848 = vmatprep.subr.bf16.mxu0 %v683
    %849 = vmatpush1.bf16.msra.mxu0 %v682
    %850 = vmatprep.subr.bf16.mxu0 %v687
    %851 = vmatpush1.bf16.msra.mxu0 %v686
    %852 = vmatprep.subr.bf16.mxu0 %v691
    %853 = vmatpush1.bf16.msra.mxu0 %v690
    %854 = vmatprep.mubr.bf16.mxu0 %v319
    %855 = vmatmul.mubr.bf16.gmra.mrb[0].mxu0 %v318
    %v856 = vpop.f32.mrb[0].mxu0
    %v857 = vadd.f32 %v325, %v856
    %v858 = vpop.f32.mrb[0].mxu0
    %v859 = vadd.f32 %v329, %v858
    %v860 = vpop.f32.mrb[0].mxu0
    %v861 = vpop.f32.mrb[0].mxu0
    %862 = vdwg.mxu0
    %863 = vmatprep.subr.bf16.mxu0 %v695
    %864 = vmatpush1.bf16.msra.mxu0 %v694
    %865 = vmatprep.subr.bf16.mxu0 %v699
    %866 = vmatpush1.bf16.msra.mxu0 %v698
    %867 = vmatprep.subr.bf16.mxu0 %v703
    %868 = vmatpush1.bf16.msra.mxu0 %v702
    %869 = vmatprep.subr.bf16.mxu0 %v707
    %870 = vmatpush1.bf16.msra.mxu0 %v706
    %871 = vmatprep.subr.bf16.mxu0 %v711
    %872 = vmatpush1.bf16.msra.mxu0 %v710
    %873 = vmatprep.subr.bf16.mxu0 %v715
    %874 = vmatpush1.bf16.msra.mxu0 %v714
    %875 = vmatprep.subr.bf16.mxu0 %v719
    %876 = vmatpush1.bf16.msra.mxu0 %v718
    %877 = vmatprep.subr.bf16.mxu0 %v723
    %878 = vmatpush1.bf16.msra.mxu0 %v722
    %879 = vmatprep.subr.bf16.mxu0 0
    %880 = vmatpush1.bf16.msra.mxu0 0
    %881 = vmatprep.subr.bf16.mxu0 0
    %882 = vmatpush1.bf16.msra.mxu0 0
    %883 = vmatprep.subr.bf16.mxu0 0
    %884 = vmatpush1.bf16.msra.mxu0 0
    %885 = vmatprep.subr.bf16.mxu0 0
    %886 = vmatpush1.bf16.msra.mxu0 0
    %887 = vmatprep.subr.bf16.mxu0 0
    %888 = vmatpush1.bf16.msra.mxu0 0
    %889 = vmatprep.subr.bf16.mxu0 0
    %890 = vmatpush1.bf16.msra.mxu0 0
    %891 = vmatprep.subr.bf16.mxu0 0
    %892 = vmatpush1.bf16.msra.mxu0 0
    %893 = vmatprep.subr.bf16.mxu0 0
    %894 = vmatpush1.bf16.msra.mxu0 0
    %895 = vmatprep.mubr.bf16.mxu0 0
    %896 = vmatmul.mubr.bf16.gmra.mrb[0].mxu0 %v320
    %v897 = vpop.f32.mrb[0].mxu0
    %v898 = vadd.f32 %v857, %v897
    %v899 = vpop.f32.mrb[0].mxu0
    %v900 = vadd.f32 %v859, %v899
    %v901 = vpop.f32.mrb[0].mxu0
    %v902 = vpop.f32.mrb[0].mxu0
    %903 = vdwg.mxu0
    %904 = vmatprep.subr.bf16.mxu0 %v633
    %905 = vmatpush1.bf16.msra.mxu0 %v632
    %906 = vmatprep.subr.bf16.mxu0 %v637
    %907 = vmatpush1.bf16.msra.mxu0 %v636
    %908 = vmatprep.subr.bf16.mxu0 %v641
    %909 = vmatpush1.bf16.msra.mxu0 %v640
    %910 = vmatprep.subr.bf16.mxu0 %v645
    %911 = vmatpush1.bf16.msra.mxu0 %v644
    %912 = vmatprep.subr.bf16.mxu0 %v649
    %913 = vmatpush1.bf16.msra.mxu0 %v648
    %914 = vmatprep.subr.bf16.mxu0 %v653
    %915 = vmatpush1.bf16.msra.mxu0 %v652
    %916 = vmatprep.subr.bf16.mxu0 %v657
    %917 = vmatpush1.bf16.msra.mxu0 %v656
    %918 = vmatprep.subr.bf16.mxu0 %v661
    %919 = vmatpush1.bf16.msra.mxu0 %v660
    %920 = vmatprep.subr.bf16.mxu0 %v665
    %921 = vmatpush1.bf16.msra.mxu0 %v664
    %922 = vmatprep.subr.bf16.mxu0 %v669
    %923 = vmatpush1.bf16.msra.mxu0 %v668
    %924 = vmatprep.subr.bf16.mxu0 %v673
    %925 = vmatpush1.bf16.msra.mxu0 %v672
    %926 = vmatprep.subr.bf16.mxu0 %v677
    %927 = vmatpush1.bf16.msra.mxu0 %v676
    %928 = vmatprep.subr.bf16.mxu0 %v681
    %929 = vmatpush1.bf16.msra.mxu0 %v680
    %930 = vmatprep.subr.bf16.mxu0 %v685
    %931 = vmatpush1.bf16.msra.mxu0 %v684
    %932 = vmatprep.subr.bf16.mxu0 %v689
    %933 = vmatpush1.bf16.msra.mxu0 %v688
    %934 = vmatprep.subr.bf16.mxu0 %v693
    %935 = vmatpush1.bf16.msra.mxu0 %v692
    %936 = vmatprep.mubr.bf16.mxu0 %v319
    %937 = vmatmul.mubr.bf16.gmra.mrb[0].mxu0 %v318
    %v938 = vpop.f32.mrb[0].mxu0
    %v939 = vadd.f32 %v333, %v938
    %v940 = vpop.f32.mrb[0].mxu0
    %v941 = vadd.f32 %v337, %v940
    %v942 = vpop.f32.mrb[0].mxu0
    %v943 = vpop.f32.mrb[0].mxu0
    %944 = vdwg.mxu0
    %945 = vmatprep.subr.bf16.mxu0 %v697
    %946 = vmatpush1.bf16.msra.mxu0 %v696
    %947 = vmatprep.subr.bf16.mxu0 %v701
    %948 = vmatpush1.bf16.msra.mxu0 %v700
    %949 = vmatprep.subr.bf16.mxu0 %v705
    %950 = vmatpush1.bf16.msra.mxu0 %v704
    %951 = vmatprep.subr.bf16.mxu0 %v709
    %952 = vmatpush1.bf16.msra.mxu0 %v708
    %953 = vmatprep.subr.bf16.mxu0 %v713
    %954 = vmatpush1.bf16.msra.mxu0 %v712
    %955 = vmatprep.subr.bf16.mxu0 %v717
    %956 = vmatpush1.bf16.msra.mxu0 %v716
    %957 = vmatprep.subr.bf16.mxu0 %v721
    %958 = vmatpush1.bf16.msra.mxu0 %v720
    %959 = vmatprep.subr.bf16.mxu0 %v725
    %960 = vmatpush1.bf16.msra.mxu0 %v724
    %961 = vmatprep.subr.bf16.mxu0 0
    %962 = vmatpush1.bf16.msra.mxu0 0
    %963 = vmatprep.subr.bf16.mxu0 0
    %964 = vmatpush1.bf16.msra.mxu0 0
    %965 = vmatprep.subr.bf16.mxu0 0
    %966 = vmatpush1.bf16.msra.mxu0 0
    %967 = vmatprep.subr.bf16.mxu0 0
    %968 = vmatpush1.bf16.msra.mxu0 0
    %969 = vmatprep.subr.bf16.mxu0 0
    %970 = vmatpush1.bf16.msra.mxu0 0
    %971 = vmatprep.subr.bf16.mxu0 0
    %972 = vmatpush1.bf16.msra.mxu0 0
    %973 = vmatprep.subr.bf16.mxu0 0
    %974 = vmatpush1.bf16.msra.mxu0 0
    %975 = vmatprep.subr.bf16.mxu0 0
    %976 = vmatpush1.bf16.msra.mxu0 0
    %977 = vmatprep.mubr.bf16.mxu0 0
    %978 = vmatmul.mubr.bf16.gmra.mrb[0].mxu0 %v320
    %v979 = vpop.f32.mrb[0].mxu0
    %v980 = vadd.f32 %v939, %v979
    %v981 = vpop.f32.mrb[0].mxu0
    %v982 = vadd.f32 %v941, %v981
    %v983 = vpop.f32.mrb[0].mxu0
    %v984 = vpop.f32.mrb[0].mxu0
    %985 = vdwg.mxu0
    %v986 = vmax.f32 %v898, 0.0
    %v987 = vmax.f32 %v900, 0.0
    %v988 = vmax.f32 %v980, 0.0
    %v989 = vmax.f32 %v982, 0.0
    %v990 = vpack.c.bf16 %v986, %v986
    %v991 = vpack.c.bf16 %v987, %v987
    %v992 = vpack.c.bf16 %v988, %v988
    %v993 = vpack.c.bf16 %v989, %v989
    %v995 = vlaneseq
    %v996 = vshrl.u32 %v995, 7
    %v997 = vsub.s32 0, %v996
    %v998 = vrot.slane %v263, %v997
    %v999 = vlaneseq
    %v1000 = vshrl.u32 %v999, 7
    %v1001 = vsub.s32 1, %v1000
    %v1002 = vrot.slane %v263, %v1001
    %v1069 = vunpack.c.l.b16 %v199
    %v1070 = vunpack.c.h.b16 %v199
    %v1071 = vunpack.c.l.b16 %v200
    %v1072 = vunpack.c.h.b16 %v200
    %v1073 = vunpack.c.l.b16 %v201
    %v1074 = vunpack.c.h.b16 %v201
    %v1075 = vunpack.c.l.b16 %v202
    %v1076 = vunpack.c.h.b16 %v202
    %v1077 = vunpack.c.l.b16 %v203
    %v1078 = vunpack.c.h.b16 %v203
    %v1079 = vunpack.c.l.b16 %v204
    %v1080 = vunpack.c.h.b16 %v204
    %v1081 = vunpack.c.l.b16 %v205
    %v1082 = vunpack.c.h.b16 %v205
    %v1083 = vunpack.c.l.b16 %v206
    %v1084 = vunpack.c.h.b16 %v206
    %v1085 = vunpack.c.l.b16 %v207
    %v1086 = vunpack.c.h.b16 %v207
    %v1087 = vunpack.c.l.b16 %v208
    %v1088 = vunpack.c.h.b16 %v208
    %v1089 = vunpack.c.l.b16 %v209
    %v1090 = vunpack.c.h.b16 %v209
    %v1091 = vunpack.c.l.b16 %v210
    %v1092 = vunpack.c.h.b16 %v210
    %v1093 = vunpack.c.l.b16 %v211
    %v1094 = vunpack.c.h.b16 %v211
    %v1095 = vunpack.c.l.b16 %v212
    %v1096 = vunpack.c.h.b16 %v212
    %v1097 = vunpack.c.l.b16 %v213
    %v1098 = vunpack.c.h.b16 %v213
    %v1099 = vunpack.c.l.b16 %v214
    %v1100 = vunpack.c.h.b16 %v214
    %v1101 = vunpack.c.l.b16 %v215
    %v1102 = vunpack.c.h.b16 %v215
    %v1103 = vunpack.c.l.b16 %v216
    %v1104 = vunpack.c.h.b16 %v216
    %v1105 = vunpack.c.l.b16 %v217
    %v1106 = vunpack.c.h.b16 %v217
    %v1107 = vunpack.c.l.b16 %v218
    %v1108 = vunpack.c.h.b16 %v218
    %v1109 = vunpack.c.l.b16 %v219
    %v1110 = vunpack.c.h.b16 %v219
    %v1111 = vunpack.c.l.b16 %v220
    %v1112 = vunpack.c.h.b16 %v220
    %v1113 = vunpack.c.l.b16 %v221
    %v1114 = vunpack.c.h.b16 %v221
    %v1115 = vunpack.c.l.b16 %v222
    %v1116 = vunpack.c.h.b16 %v222
    %v1117 = vunpack.c.l.b16 %v223
    %v1118 = vunpack.c.h.b16 %v223
    %v1119 = vunpack.c.l.b16 %v224
    %v1120 = vunpack.c.h.b16 %v224
    %v1121 = vunpack.c.l.b16 %v225
    %v1122 = vunpack.c.h.b16 %v225
    %v1123 = vunpack.c.l.b16 %v226
    %v1124 = vunpack.c.h.b16 %v226
    %v1125 = vunpack.c.l.b16 %v227
    %v1126 = vunpack.c.h.b16 %v227
    %v1127 = vunpack.c.l.b16 %v228
    %v1128 = vunpack.c.h.b16 %v228
    %v1129 = vunpack.c.l.b16 %v229
    %v1130 = vunpack.c.h.b16 %v229
    %v1131 = vunpack.c.l.b16 %v230
    %v1132 = vunpack.c.h.b16 %v230
    %v1133 = vunpack.c.l.b16 %v231
    %v1134 = vunpack.c.h.b16 %v231
    %v1135 = vunpack.c.l.b16 %v232
    %v1136 = vunpack.c.h.b16 %v232
    %v1137 = vunpack.c.l.b16 %v233
    %v1138 = vunpack.c.h.b16 %v233
    %v1139 = vunpack.c.l.b16 %v234
    %v1140 = vunpack.c.h.b16 %v234
    %v1141 = vunpack.c.l.b16 %v235
    %v1142 = vunpack.c.h.b16 %v235
    %v1143 = vunpack.c.l.b16 %v236
    %v1144 = vunpack.c.h.b16 %v236
    %v1145 = vunpack.c.l.b16 %v237
    %v1146 = vunpack.c.h.b16 %v237
    %v1147 = vunpack.c.l.b16 %v238
    %v1148 = vunpack.c.h.b16 %v238
    %v1149 = vunpack.c.l.b16 %v239
    %v1150 = vunpack.c.h.b16 %v239
    %v1151 = vunpack.c.l.b16 %v240
    %v1152 = vunpack.c.h.b16 %v240
    %v1153 = vunpack.c.l.b16 %v241
    %v1154 = vunpack.c.h.b16 %v241
    %v1155 = vunpack.c.l.b16 %v242
    %v1156 = vunpack.c.h.b16 %v242
    %v1157 = vunpack.c.l.b16 %v243
    %v1158 = vunpack.c.h.b16 %v243
    %v1159 = vunpack.c.l.b16 %v244
    %v1160 = vunpack.c.h.b16 %v244
    %v1161 = vunpack.c.l.b16 %v245
    %v1162 = vunpack.c.h.b16 %v245
    %v1163 = vunpack.c.l.b16 %v246
    %v1164 = vunpack.c.h.b16 %v246
    %v1165 = vunpack.c.l.b16 %v247
    %v1166 = vunpack.c.h.b16 %v247
    %v1167 = vunpack.c.l.b16 %v248
    %v1168 = vunpack.c.h.b16 %v248
    %v1169 = vunpack.c.l.b16 %v249
    %v1170 = vunpack.c.h.b16 %v249
    %v1171 = vunpack.c.l.b16 %v250
    %v1172 = vunpack.c.h.b16 %v250
    %v1173 = vunpack.c.l.b16 %v251
    %v1174 = vunpack.c.h.b16 %v251
    %v1175 = vunpack.c.l.b16 %v252
    %v1176 = vunpack.c.h.b16 %v252
    %v1177 = vunpack.c.l.b16 %v253
    %v1178 = vunpack.c.h.b16 %v253
    %v1179 = vunpack.c.l.b16 %v254
    %v1180 = vunpack.c.h.b16 %v254
    %v1181 = vunpack.c.l.b16 %v255
    %v1182 = vunpack.c.h.b16 %v255
    %v1183 = vunpack.c.l.b16 %v256
    %v1184 = vunpack.c.h.b16 %v256
    %v1185 = vunpack.c.l.b16 %v257
    %v1186 = vunpack.c.h.b16 %v257
    %v1187 = vunpack.c.l.b16 %v258
    %v1188 = vunpack.c.h.b16 %v258
    %v1189 = vunpack.c.l.b16 %v259
    %v1190 = vunpack.c.h.b16 %v259
    %v1191 = vunpack.c.l.b16 %v260
    %v1192 = vunpack.c.h.b16 %v260
    %v1193 = vunpack.c.l.b16 %v261
    %v1194 = vunpack.c.h.b16 %v261
    %v1195 = vunpack.c.l.b16 %v262
    %v1196 = vunpack.c.h.b16 %v262
    %v1197 = vpack.c.b16 %v1071, %v1069
    %v1198 = vpack.c.b16 %v1072, %v1070
    %v1199 = vpack.c.b16 %v1075, %v1073
    %v1200 = vpack.c.b16 %v1076, %v1074
    %v1201 = vpack.c.b16 %v1079, %v1077
    %v1202 = vpack.c.b16 %v1080, %v1078
    %v1203 = vpack.c.b16 %v1083, %v1081
    %v1204 = vpack.c.b16 %v1084, %v1082
    %v1205 = vpack.c.b16 %v1087, %v1085
    %v1206 = vpack.c.b16 %v1088, %v1086
    %v1207 = vpack.c.b16 %v1091, %v1089
    %v1208 = vpack.c.b16 %v1092, %v1090
    %v1209 = vpack.c.b16 %v1095, %v1093
    %v1210 = vpack.c.b16 %v1096, %v1094
    %v1211 = vpack.c.b16 %v1099, %v1097
    %v1212 = vpack.c.b16 %v1100, %v1098
    %v1213 = vpack.c.b16 %v1103, %v1101
    %v1214 = vpack.c.b16 %v1104, %v1102
    %v1215 = vpack.c.b16 %v1107, %v1105
    %v1216 = vpack.c.b16 %v1108, %v1106
    %v1217 = vpack.c.b16 %v1111, %v1109
    %v1218 = vpack.c.b16 %v1112, %v1110
    %v1219 = vpack.c.b16 %v1115, %v1113
    %v1220 = vpack.c.b16 %v1116, %v1114
    %v1221 = vpack.c.b16 %v1119, %v1117
    %v1222 = vpack.c.b16 %v1120, %v1118
    %v1223 = vpack.c.b16 %v1123, %v1121
    %v1224 = vpack.c.b16 %v1124, %v1122
    %v1225 = vpack.c.b16 %v1127, %v1125
    %v1226 = vpack.c.b16 %v1128, %v1126
    %v1227 = vpack.c.b16 %v1131, %v1129
    %v1228 = vpack.c.b16 %v1132, %v1130
    %v1229 = vpack.c.b16 %v1135, %v1133
    %v1230 = vpack.c.b16 %v1136, %v1134
    %v1231 = vpack.c.b16 %v1139, %v1137
    %v1232 = vpack.c.b16 %v1140, %v1138
    %v1233 = vpack.c.b16 %v1143, %v1141
    %v1234 = vpack.c.b16 %v1144, %v1142
    %v1235 = vpack.c.b16 %v1147, %v1145
    %v1236 = vpack.c.b16 %v1148, %v1146
    %v1237 = vpack.c.b16 %v1151, %v1149
    %v1238 = vpack.c.b16 %v1152, %v1150
    %v1239 = vpack.c.b16 %v1155, %v1153
    %v1240 = vpack.c.b16 %v1156, %v1154
    %v1241 = vpack.c.b16 %v1159, %v1157
    %v1242 = vpack.c.b16 %v1160, %v1158
    %v1243 = vpack.c.b16 %v1163, %v1161
    %v1244 = vpack.c.b16 %v1164, %v1162
    %v1245 = vpack.c.b16 %v1167, %v1165
    %v1246 = vpack.c.b16 %v1168, %v1166
    %v1247 = vpack.c.b16 %v1171, %v1169
    %v1248 = vpack.c.b16 %v1172, %v1170
    %v1249 = vpack.c.b16 %v1175, %v1173
    %v1250 = vpack.c.b16 %v1176, %v1174
    %v1251 = vpack.c.b16 %v1179, %v1177
    %v1252 = vpack.c.b16 %v1180, %v1178
    %v1253 = vpack.c.b16 %v1183, %v1181
    %v1254 = vpack.c.b16 %v1184, %v1182
    %v1255 = vpack.c.b16 %v1187, %v1185
    %v1256 = vpack.c.b16 %v1188, %v1186
    %v1257 = vpack.c.b16 %v1191, %v1189
    %v1258 = vpack.c.b16 %v1192, %v1190
    %v1259 = vpack.c.b16 %v1195, %v1193
    %v1260 = vpack.c.b16 %v1196, %v1194
    %1325 = vmatprep.subr.bf16.mxu0 %v1198
    %1326 = vmatpush1.bf16.msra.mxu0 %v1197
    %1327 = vmatprep.subr.bf16.mxu0 %v1200
    %1328 = vmatpush1.bf16.msra.mxu0 %v1199
    %1329 = vmatprep.subr.bf16.mxu0 %v1202
    %1330 = vmatpush1.bf16.msra.mxu0 %v1201
    %1331 = vmatprep.subr.bf16.mxu0 %v1204
    %1332 = vmatpush1.bf16.msra.mxu0 %v1203
    %1333 = vmatprep.subr.bf16.mxu0 %v1206
    %1334 = vmatpush1.bf16.msra.mxu0 %v1205
    %1335 = vmatprep.subr.bf16.mxu0 %v1208
    %1336 = vmatpush1.bf16.msra.mxu0 %v1207
    %1337 = vmatprep.subr.bf16.mxu0 %v1210
    %1338 = vmatpush1.bf16.msra.mxu0 %v1209
    %1339 = vmatprep.subr.bf16.mxu0 %v1212
    %1340 = vmatpush1.bf16.msra.mxu0 %v1211
    %1341 = vmatprep.subr.bf16.mxu0 %v1214
    %1342 = vmatpush1.bf16.msra.mxu0 %v1213
    %1343 = vmatprep.subr.bf16.mxu0 %v1216
    %1344 = vmatpush1.bf16.msra.mxu0 %v1215
    %1345 = vmatprep.subr.bf16.mxu0 %v1218
    %1346 = vmatpush1.bf16.msra.mxu0 %v1217
    %1347 = vmatprep.subr.bf16.mxu0 %v1220
    %1348 = vmatpush1.bf16.msra.mxu0 %v1219
    %1349 = vmatprep.subr.bf16.mxu0 %v1222
    %1350 = vmatpush1.bf16.msra.mxu0 %v1221
    %1351 = vmatprep.subr.bf16.mxu0 %v1224
    %1352 = vmatpush1.bf16.msra.mxu0 %v1223
    %1353 = vmatprep.subr.bf16.mxu0 %v1226
    %1354 = vmatpush1.bf16.msra.mxu0 %v1225
    %1355 = vmatprep.subr.bf16.mxu0 %v1228
    %1356 = vmatpush1.bf16.msra.mxu0 %v1227
    %1357 = vmatprep.mubr.bf16.mxu0 %v991
    %1358 = vmatmul.mubr.bf16.gmra.mrb[0].mxu0 %v990
    %v1359 = vpop.f32.mrb[0].mxu0
    %v1360 = vadd.f32 %v998, %v1359
    %v1361 = vpop.f32.mrb[0].mxu0
    %v1362 = vadd.f32 %v1002, %v1361
    %v1363 = vpop.f32.mrb[0].mxu0
    %v1364 = vpop.f32.mrb[0].mxu0
    %1365 = vdwg.mxu0
    %1366 = vmatprep.subr.bf16.mxu0 %v1230
    %1367 = vmatpush1.bf16.msra.mxu0 %v1229
    %1368 = vmatprep.subr.bf16.mxu0 %v1232
    %1369 = vmatpush1.bf16.msra.mxu0 %v1231
    %1370 = vmatprep.subr.bf16.mxu0 %v1234
    %1371 = vmatpush1.bf16.msra.mxu0 %v1233
    %1372 = vmatprep.subr.bf16.mxu0 %v1236
    %1373 = vmatpush1.bf16.msra.mxu0 %v1235
    %1374 = vmatprep.subr.bf16.mxu0 %v1238
    %1375 = vmatpush1.bf16.msra.mxu0 %v1237
    %1376 = vmatprep.subr.bf16.mxu0 %v1240
    %1377 = vmatpush1.bf16.msra.mxu0 %v1239
    %1378 = vmatprep.subr.bf16.mxu0 %v1242
    %1379 = vmatpush1.bf16.msra.mxu0 %v1241
    %1380 = vmatprep.subr.bf16.mxu0 %v1244
    %1381 = vmatpush1.bf16.msra.mxu0 %v1243
    %1382 = vmatprep.subr.bf16.mxu0 %v1246
    %1383 = vmatpush1.bf16.msra.mxu0 %v1245
    %1384 = vmatprep.subr.bf16.mxu0 %v1248
    %1385 = vmatpush1.bf16.msra.mxu0 %v1247
    %1386 = vmatprep.subr.bf16.mxu0 %v1250
    %1387 = vmatpush1.bf16.msra.mxu0 %v1249
    %1388 = vmatprep.subr.bf16.mxu0 %v1252
    %1389 = vmatpush1.bf16.msra.mxu0 %v1251
    %1390 = vmatprep.subr.bf16.mxu0 %v1254
    %1391 = vmatpush1.bf16.msra.mxu0 %v1253
    %1392 = vmatprep.subr.bf16.mxu0 %v1256
    %1393 = vmatpush1.bf16.msra.mxu0 %v1255
    %1394 = vmatprep.subr.bf16.mxu0 %v1258
    %1395 = vmatpush1.bf16.msra.mxu0 %v1257
    %1396 = vmatprep.subr.bf16.mxu0 %v1260
    %1397 = vmatpush1.bf16.msra.mxu0 %v1259
    %1398 = vmatprep.mubr.bf16.mxu0 %v993
    %1399 = vmatmul.mubr.bf16.gmra.mrb[0].mxu0 %v992
    %v1400 = vpop.f32.mrb[0].mxu0
    %v1401 = vadd.f32 %v1360, %v1400
    %v1402 = vpop.f32.mrb[0].mxu0
    %v1403 = vadd.f32 %v1362, %v1402
    %v1404 = vpop.f32.mrb[0].mxu0
    %v1405 = vpop.f32.mrb[0].mxu0
    %1406 = vdwg.mxu0
    %v1407 = vmax.f32 %v1401, 0.0
    %v1408 = vmax.f32 %v1403, 0.0
    %v1409 = vpack.c.bf16 %v1407, %v1407
    %v1410 = vpack.c.bf16 %v1408, %v1408
    %v1412 = vlaneseq
    %v1413 = vshrl.u32 %v1412, 7
    %v1414 = vsub.s32 0, %v1413
    %v1415 = vrot.slane %v296, %v1414
    %v1449 = vunpack.c.l.b16 %v264
    %v1450 = vunpack.c.l.b16 %v265
    %v1451 = vunpack.c.l.b16 %v266
    %v1452 = vunpack.c.l.b16 %v267
    %v1453 = vunpack.c.l.b16 %v268
    %v1454 = vunpack.c.l.b16 %v269
    %v1455 = vunpack.c.l.b16 %v270
    %v1456 = vunpack.c.l.b16 %v271
    %v1457 = vunpack.c.l.b16 %v272
    %v1458 = vunpack.c.l.b16 %v273
    %v1459 = vunpack.c.l.b16 %v274
    %v1460 = vunpack.c.l.b16 %v275
    %v1461 = vunpack.c.l.b16 %v276
    %v1462 = vunpack.c.l.b16 %v277
    %v1463 = vunpack.c.l.b16 %v278
    %v1464 = vunpack.c.l.b16 %v279
    %v1465 = vunpack.c.l.b16 %v280
    %v1466 = vunpack.c.l.b16 %v281
    %v1467 = vunpack.c.l.b16 %v282
    %v1468 = vunpack.c.l.b16 %v283
    %v1469 = vunpack.c.l.b16 %v284
    %v1470 = vunpack.c.l.b16 %v285
    %v1471 = vunpack.c.l.b16 %v286
    %v1472 = vunpack.c.l.b16 %v287
    %v1473 = vunpack.c.l.b16 %v288
    %v1474 = vunpack.c.l.b16 %v289
    %v1475 = vunpack.c.l.b16 %v290
    %v1476 = vunpack.c.l.b16 %v291
    %v1477 = vunpack.c.l.b16 %v292
    %v1478 = vunpack.c.l.b16 %v293
    %v1479 = vunpack.c.l.b16 %v294
    %v1480 = vunpack.c.l.b16 %v295
    %v1481 = vpack.c.b16 %v1450, %v1449
    %v1482 = vpack.c.b16 %v1452, %v1451
    %v1483 = vpack.c.b16 %v1454, %v1453
    %v1484 = vpack.c.b16 %v1456, %v1455
    %v1485 = vpack.c.b16 %v1458, %v1457
    %v1486 = vpack.c.b16 %v1460, %v1459
    %v1487 = vpack.c.b16 %v1462, %v1461
    %v1488 = vpack.c.b16 %v1464, %v1463
    %v1489 = vpack.c.b16 %v1466, %v1465
    %v1490 = vpack.c.b16 %v1468, %v1467
    %v1491 = vpack.c.b16 %v1470, %v1469
    %v1492 = vpack.c.b16 %v1472, %v1471
    %v1493 = vpack.c.b16 %v1474, %v1473
    %v1494 = vpack.c.b16 %v1476, %v1475
    %v1495 = vpack.c.b16 %v1478, %v1477
    %v1496 = vpack.c.b16 %v1480, %v1479
    %1513 = vmatprep.subr.bf16.mxu0 0
    %1514 = vmatpush1.bf16.msra.mxu0 %v1481
    %1515 = vmatprep.subr.bf16.mxu0 0
    %1516 = vmatpush1.bf16.msra.mxu0 %v1482
    %1517 = vmatprep.subr.bf16.mxu0 0
    %1518 = vmatpush1.bf16.msra.mxu0 %v1483
    %1519 = vmatprep.subr.bf16.mxu0 0
    %1520 = vmatpush1.bf16.msra.mxu0 %v1484
    %1521 = vmatprep.subr.bf16.mxu0 0
    %1522 = vmatpush1.bf16.msra.mxu0 %v1485
    %1523 = vmatprep.subr.bf16.mxu0 0
    %1524 = vmatpush1.bf16.msra.mxu0 %v1486
    %1525 = vmatprep.subr.bf16.mxu0 0
    %1526 = vmatpush1.bf16.msra.mxu0 %v1487
    %1527 = vmatprep.subr.bf16.mxu0 0
    %1528 = vmatpush1.bf16.msra.mxu0 %v1488
    %1529 = vmatprep.subr.bf16.mxu0 0
    %1530 = vmatpush1.bf16.msra.mxu0 %v1489
    %1531 = vmatprep.subr.bf16.mxu0 0
    %1532 = vmatpush1.bf16.msra.mxu0 %v1490
    %1533 = vmatprep.subr.bf16.mxu0 0
    %1534 = vmatpush1.bf16.msra.mxu0 %v1491
    %1535 = vmatprep.subr.bf16.mxu0 0
    %1536 = vmatpush1.bf16.msra.mxu0 %v1492
    %1537 = vmatprep.subr.bf16.mxu0 0
    %1538 = vmatpush1.bf16.msra.mxu0 %v1493
    %1539 = vmatprep.subr.bf16.mxu0 0
    %1540 = vmatpush1.bf16.msra.mxu0 %v1494
    %1541 = vmatprep.subr.bf16.mxu0 0
    %1542 = vmatpush1.bf16.msra.mxu0 %v1495
    %1543 = vmatprep.subr.bf16.mxu0 0
    %1544 = vmatpush1.bf16.msra.mxu0 %v1496
    %1545 = vmatprep.mubr.bf16.mxu0 %v1410
    %1546 = vmatmul.mubr.bf16.gmra.mrb[0].mxu0 %v1409
    %v1547 = vpop.f32.mrb[0].mxu0
    %v1548 = vadd.f32 %v1415, %v1547
    %v1549 = vpop.f32.mrb[0].mxu0
    %v1550 = vpop.f32.mrb[0].mxu0
    %v1551 = vpop.f32.mrb[0].mxu0
    %1552 = vdwg.mxu0
    %1553 = vst [vmem:[#allocation11] sm:$0x3] %v1548
    %v1554 = vld [vmem:[#allocation5] sm:$0x3f]
    %v1556 = vcombine.high %v1554, %v1554
    %v1558 = vunpack.c.l.s4 1983009808
    %v1559 = vunpack.c.0.s8 %v1558
    %v1560 = vlaneseq
    %v1561 = vshrl.u32 %v1560, 7
    %v1562 = vsub.s32 %v1559, %v1561
    %v1563 = vrot.slane %v1554, %v1562
    %v1565 = vunpack.c.l.s4 1983009808
    %v1566 = vunpack.c.0.s8 %v1565
    %v1567 = vlaneseq
    %v1568 = vshrl.u32 %v1567, 7
    %v1569 = vsub.s32 %v1566, %v1568
    %v1570 = vrot.slane %v1556, %v1569
    %v1571 = vcombine.high %v1563, %v1563
    %v1575 = vpack.c.bf16 %v1563, %v1563
    %v1576 = vpack.c.bf16 %v1571, %v1571
    %v1577 = vpack.c.bf16 %v1570, %v1570
    %1578 = vmatprep.subr.bf16.mxu0 %v631
    %1579 = vmatpush1.bf16.msra.mxu0 %v630
    %1580 = vmatprep.subr.bf16.mxu0 %v635
    %1581 = vmatpush1.bf16.msra.mxu0 %v634
    %1582 = vmatprep.subr.bf16.mxu0 %v639
    %1583 = vmatpush1.bf16.msra.mxu0 %v638
    %1584 = vmatprep.subr.bf16.mxu0 %v643
    %1585 = vmatpush1.bf16.msra.mxu0 %v642
    %1586 = vmatprep.subr.bf16.mxu0 %v647
    %1587 = vmatpush1.bf16.msra.mxu0 %v646
    %1588 = vmatprep.subr.bf16.mxu0 %v651
    %1589 = vmatpush1.bf16.msra.mxu0 %v650
    %1590 = vmatprep.subr.bf16.mxu0 %v655
    %1591 = vmatpush1.bf16.msra.mxu0 %v654
    %1592 = vmatprep.subr.bf16.mxu0 %v659
    %1593 = vmatpush1.bf16.msra.mxu0 %v658
    %1594 = vmatprep.subr.bf16.mxu0 %v663
    %1595 = vmatpush1.bf16.msra.mxu0 %v662
    %1596 = vmatprep.subr.bf16.mxu0 %v667
    %1597 = vmatpush1.bf16.msra.mxu0 %v666
    %1598 = vmatprep.subr.bf16.mxu0 %v671
    %1599 = vmatpush1.bf16.msra.mxu0 %v670
    %1600 = vmatprep.subr.bf16.mxu0 %v675
    %1601 = vmatpush1.bf16.msra.mxu0 %v674
    %1602 = vmatprep.subr.bf16.mxu0 %v679
    %1603 = vmatpush1.bf16.msra.mxu0 %v678
    %1604 = vmatprep.subr.bf16.mxu0 %v683
    %1605 = vmatpush1.bf16.msra.mxu0 %v682
    %1606 = vmatprep.subr.bf16.mxu0 %v687
    %1607 = vmatpush1.bf16.msra.mxu0 %v686
    %1608 = vmatprep.subr.bf16.mxu0 %v691
    %1609 = vmatpush1.bf16.msra.mxu0 %v690
    %1610 = vmatprep.mubr.bf16.mxu0 %v1576
    %1611 = vmatmul.mubr.bf16.gmra.mrb[0].mxu0 %v1575
    %v1612 = vpop.f32.mrb[0].mxu0
    %v1613 = vadd.f32 %v325, %v1612
    %v1614 = vpop.f32.mrb[0].mxu0
    %v1615 = vadd.f32 %v329, %v1614
    %v1616 = vpop.f32.mrb[0].mxu0
    %v1617 = vpop.f32.mrb[0].mxu0
    %1618 = vdwg.mxu0
    %1619 = vmatprep.subr.bf16.mxu0 %v695
    %1620 = vmatpush1.bf16.msra.mxu0 %v694
    %1621 = vmatprep.subr.bf16.mxu0 %v699
    %1622 = vmatpush1.bf16.msra.mxu0 %v698
    %1623 = vmatprep.subr.bf16.mxu0 %v703
    %1624 = vmatpush1.bf16.msra.mxu0 %v702
    %1625 = vmatprep.subr.bf16.mxu0 %v707
    %1626 = vmatpush1.bf16.msra.mxu0 %v706
    %1627 = vmatprep.subr.bf16.mxu0 %v711
    %1628 = vmatpush1.bf16.msra.mxu0 %v710
    %1629 = vmatprep.subr.bf16.mxu0 %v715
    %1630 = vmatpush1.bf16.msra.mxu0 %v714
    %1631 = vmatprep.subr.bf16.mxu0 %v719
    %1632 = vmatpush1.bf16.msra.mxu0 %v718
    %1633 = vmatprep.subr.bf16.mxu0 %v723
    %1634 = vmatpush1.bf16.msra.mxu0 %v722
    %1635 = vmatprep.subr.bf16.mxu0 0
    %1636 = vmatpush1.bf16.msra.mxu0 0
    %1637 = vmatprep.subr.bf16.mxu0 0
    %1638 = vmatpush1.bf16.msra.mxu0 0
    %1639 = vmatprep.subr.bf16.mxu0 0
    %1640 = vmatpush1.bf16.msra.mxu0 0
    %1641 = vmatprep.subr.bf16.mxu0 0
    %1642 = vmatpush1.bf16.msra.mxu0 0
    %1643 = vmatprep.subr.bf16.mxu0 0
    %1644 = vmatpush1.bf16.msra.mxu0 0
    %1645 = vmatprep.subr.bf16.mxu0 0
    %1646 = vmatpush1.bf16.msra.mxu0 0
    %1647 = vmatprep.subr.bf16.mxu0 0
    %1648 = vmatpush1.bf16.msra.mxu0 0
    %1649 = vmatprep.subr.bf16.mxu0 0
    %1650 = vmatpush1.bf16.msra.mxu0 0
    %1651 = vmatprep.mubr.bf16.mxu0 0
    %1652 = vmatmul.mubr.bf16.gmra.mrb[0].mxu0 %v1577
    %v1653 = vpop.f32.mrb[0].mxu0
    %v1654 = vadd.f32 %v1613, %v1653
    %v1655 = vpop.f32.mrb[0].mxu0
    %v1656 = vadd.f32 %v1615, %v1655
    %v1657 = vpop.f32.mrb[0].mxu0
    %v1658 = vpop.f32.mrb[0].mxu0
    %1659 = vdwg.mxu0
    %1660 = vmatprep.subr.bf16.mxu0 %v633
    %1661 = vmatpush1.bf16.msra.mxu0 %v632
    %1662 = vmatprep.subr.bf16.mxu0 %v637
    %1663 = vmatpush1.bf16.msra.mxu0 %v636
    %1664 = vmatprep.subr.bf16.mxu0 %v641
    %1665 = vmatpush1.bf16.msra.mxu0 %v640
    %1666 = vmatprep.subr.bf16.mxu0 %v645
    %1667 = vmatpush1.bf16.msra.mxu0 %v644
    %1668 = vmatprep.subr.bf16.mxu0 %v649
    %1669 = vmatpush1.bf16.msra.mxu0 %v648
    %1670 = vmatprep.subr.bf16.mxu0 %v653
    %1671 = vmatpush1.bf16.msra.mxu0 %v652
    %1672 = vmatprep.subr.bf16.mxu0 %v657
    %1673 = vmatpush1.bf16.msra.mxu0 %v656
    %1674 = vmatprep.subr.bf16.mxu0 %v661
    %1675 = vmatpush1.bf16.msra.mxu0 %v660
    %1676 = vmatprep.subr.bf16.mxu0 %v665
    %1677 = vmatpush1.bf16.msra.mxu0 %v664
    %1678 = vmatprep.subr.bf16.mxu0 %v669
    %1679 = vmatpush1.bf16.msra.mxu0 %v668
    %1680 = vmatprep.subr.bf16.mxu0 %v673
    %1681 = vmatpush1.bf16.msra.mxu0 %v672
    %1682 = vmatprep.subr.bf16.mxu0 %v677
    %1683 = vmatpush1.bf16.msra.mxu0 %v676
    %1684 = vmatprep.subr.bf16.mxu0 %v681
    %1685 = vmatpush1.bf16.msra.mxu0 %v680
    %1686 = vmatprep.subr.bf16.mxu0 %v685
    %1687 = vmatpush1.bf16.msra.mxu0 %v684
    %1688 = vmatprep.subr.bf16.mxu0 %v689
    %1689 = vmatpush1.bf16.msra.mxu0 %v688
    %1690 = vmatprep.subr.bf16.mxu0 %v693
    %1691 = vmatpush1.bf16.msra.mxu0 %v692
    %1692 = vmatprep.mubr.bf16.mxu0 %v1576
    %1693 = vmatmul.mubr.bf16.gmra.mrb[0].mxu0 %v1575
    %v1694 = vpop.f32.mrb[0].mxu0
    %v1695 = vadd.f32 %v333, %v1694
    %v1696 = vpop.f32.mrb[0].mxu0
    %v1697 = vadd.f32 %v337, %v1696
    %v1698 = vpop.f32.mrb[0].mxu0
    %v1699 = vpop.f32.mrb[0].mxu0
    %1700 = vdwg.mxu0
    %1701 = vmatprep.subr.bf16.mxu0 %v697
    %1702 = vmatpush1.bf16.msra.mxu0 %v696
    %1703 = vmatprep.subr.bf16.mxu0 %v701
    %1704 = vmatpush1.bf16.msra.mxu0 %v700
    %1705 = vmatprep.subr.bf16.mxu0 %v705
    %1706 = vmatpush1.bf16.msra.mxu0 %v704
    %1707 = vmatprep.subr.bf16.mxu0 %v709
    %1708 = vmatpush1.bf16.msra.mxu0 %v708
    %1709 = vmatprep.subr.bf16.mxu0 %v713
    %1710 = vmatpush1.bf16.msra.mxu0 %v712
    %1711 = vmatprep.subr.bf16.mxu0 %v717
    %1712 = vmatpush1.bf16.msra.mxu0 %v716
    %1713 = vmatprep.subr.bf16.mxu0 %v721
    %1714 = vmatpush1.bf16.msra.mxu0 %v720
    %1715 = vmatprep.subr.bf16.mxu0 %v725
    %1716 = vmatpush1.bf16.msra.mxu0 %v724
    %1717 = vmatprep.subr.bf16.mxu0 0
    %1718 = vmatpush1.bf16.msra.mxu0 0
    %1719 = vmatprep.subr.bf16.mxu0 0
    %1720 = vmatpush1.bf16.msra.mxu0 0
    %1721 = vmatprep.subr.bf16.mxu0 0
    %1722 = vmatpush1.bf16.msra.mxu0 0
    %1723 = vmatprep.subr.bf16.mxu0 0
    %1724 = vmatpush1.bf16.msra.mxu0 0
    %1725 = vmatprep.subr.bf16.mxu0 0
    %1726 = vmatpush1.bf16.msra.mxu0 0
    %1727 = vmatprep.subr.bf16.mxu0 0
    %1728 = vmatpush1.bf16.msra.mxu0 0
    %1729 = vmatprep.subr.bf16.mxu0 0
    %1730 = vmatpush1.bf16.msra.mxu0 0
    %1731 = vmatprep.subr.bf16.mxu0 0
    %1732 = vmatpush1.bf16.msra.mxu0 0
    %1733 = vmatprep.mubr.bf16.mxu0 0
    %1734 = vmatmul.mubr.bf16.gmra.mrb[0].mxu0 %v1577
    %v1735 = vpop.f32.mrb[0].mxu0
    %v1736 = vadd.f32 %v1695, %v1735
    %v1737 = vpop.f32.mrb[0].mxu0
    %v1738 = vadd.f32 %v1697, %v1737
    %v1739 = vpop.f32.mrb[0].mxu0
    %v1740 = vpop.f32.mrb[0].mxu0
    %1741 = vdwg.mxu0
    %v1742 = vmax.f32 %v1654, 0.0
    %v1743 = vmax.f32 %v1656, 0.0
    %v1744 = vmax.f32 %v1736, 0.0
    %v1745 = vmax.f32 %v1738, 0.0
    %v1746 = vpack.c.bf16 %v1742, %v1742
    %v1747 = vpack.c.bf16 %v1743, %v1743
    %v1748 = vpack.c.bf16 %v1744, %v1744
    %v1749 = vpack.c.bf16 %v1745, %v1745
    %1750 = vmatprep.subr.bf16.mxu0 %v1198
    %1751 = vmatpush1.bf16.msra.mxu0 %v1197
    %1752 = vmatprep.subr.bf16.mxu0 %v1200
    %1753 = vmatpush1.bf16.msra.mxu0 %v1199
    %1754 = vmatprep.subr.bf16.mxu0 %v1202
    %1755 = vmatpush1.bf16.msra.mxu0 %v1201
    %1756 = vmatprep.subr.bf16.mxu0 %v1204
    %1757 = vmatpush1.bf16.msra.mxu0 %v1203
    %1758 = vmatprep.subr.bf16.mxu0 %v1206
    %1759 = vmatpush1.bf16.msra.mxu0 %v1205
    %1760 = vmatprep.subr.bf16.mxu0 %v1208
    %1761 = vmatpush1.bf16.msra.mxu0 %v1207
    %1762 = vmatprep.subr.bf16.mxu0 %v1210
    %1763 = vmatpush1.bf16.msra.mxu0 %v1209
    %1764 = vmatprep.subr.bf16.mxu0 %v1212
    %1765 = vmatpush1.bf16.msra.mxu0 %v1211
    %1766 = vmatprep.subr.bf16.mxu0 %v1214
    %1767 = vmatpush1.bf16.msra.mxu0 %v1213
    %1768 = vmatprep.subr.bf16.mxu0 %v1216
    %1769 = vmatpush1.bf16.msra.mxu0 %v1215
    %1770 = vmatprep.subr.bf16.mxu0 %v1218
    %1771 = vmatpush1.bf16.msra.mxu0 %v1217
    %1772 = vmatprep.subr.bf16.mxu0 %v1220
    %1773 = vmatpush1.bf16.msra.mxu0 %v1219
    %1774 = vmatprep.subr.bf16.mxu0 %v1222
    %1775 = vmatpush1.bf16.msra.mxu0 %v1221
    %1776 = vmatprep.subr.bf16.mxu0 %v1224
    %1777 = vmatpush1.bf16.msra.mxu0 %v1223
    %1778 = vmatprep.subr.bf16.mxu0 %v1226
    %1779 = vmatpush1.bf16.msra.mxu0 %v1225
    %1780 = vmatprep.subr.bf16.mxu0 %v1228
    %1781 = vmatpush1.bf16.msra.mxu0 %v1227
    %1782 = vmatprep.mubr.bf16.mxu0 %v1747
    %1783 = vmatmul.mubr.bf16.gmra.mrb[0].mxu0 %v1746
    %v1784 = vpop.f32.mrb[0].mxu0
    %v1785 = vadd.f32 %v998, %v1784
    %v1786 = vpop.f32.mrb[0].mxu0
    %v1787 = vadd.f32 %v1002, %v1786
    %v1788 = vpop.f32.mrb[0].mxu0
    %v1789 = vpop.f32.mrb[0].mxu0
    %1790 = vdwg.mxu0
    %1791 = vmatprep.subr.bf16.mxu0 %v1230
    %1792 = vmatpush1.bf16.msra.mxu0 %v1229
    %1793 = vmatprep.subr.bf16.mxu0 %v1232
    %1794 = vmatpush1.bf16.msra.mxu0 %v1231
    %1795 = vmatprep.subr.bf16.mxu0 %v1234
    %1796 = vmatpush1.bf16.msra.mxu0 %v1233
    %1797 = vmatprep.subr.bf16.mxu0 %v1236
    %1798 = vmatpush1.bf16.msra.mxu0 %v1235
    %1799 = vmatprep.subr.bf16.mxu0 %v1238
    %1800 = vmatpush1.bf16.msra.mxu0 %v1237
    %1801 = vmatprep.subr.bf16.mxu0 %v1240
    %1802 = vmatpush1.bf16.msra.mxu0 %v1239
    %1803 = vmatprep.subr.bf16.mxu0 %v1242
    %1804 = vmatpush1.bf16.msra.mxu0 %v1241
    %1805 = vmatprep.subr.bf16.mxu0 %v1244
    %1806 = vmatpush1.bf16.msra.mxu0 %v1243
    %1807 = vmatprep.subr.bf16.mxu0 %v1246
    %1808 = vmatpush1.bf16.msra.mxu0 %v1245
    %1809 = vmatprep.subr.bf16.mxu0 %v1248
    %1810 = vmatpush1.bf16.msra.mxu0 %v1247
    %1811 = vmatprep.subr.bf16.mxu0 %v1250
    %1812 = vmatpush1.bf16.msra.mxu0 %v1249
    %1813 = vmatprep.subr.bf16.mxu0 %v1252
    %1814 = vmatpush1.bf16.msra.mxu0 %v1251
    %1815 = vmatprep.subr.bf16.mxu0 %v1254
    %1816 = vmatpush1.bf16.msra.mxu0 %v1253
    %1817 = vmatprep.subr.bf16.mxu0 %v1256
    %1818 = vmatpush1.bf16.msra.mxu0 %v1255
    %1819 = vmatprep.subr.bf16.mxu0 %v1258
    %1820 = vmatpush1.bf16.msra.mxu0 %v1257
    %1821 = vmatprep.subr.bf16.mxu0 %v1260
    %1822 = vmatpush1.bf16.msra.mxu0 %v1259
    %1823 = vmatprep.mubr.bf16.mxu0 %v1749
    %1824 = vmatmul.mubr.bf16.gmra.mrb[0].mxu0 %v1748
    %v1825 = vpop.f32.mrb[0].mxu0
    %v1826 = vadd.f32 %v1785, %v1825
    %v1827 = vpop.f32.mrb[0].mxu0
    %v1828 = vadd.f32 %v1787, %v1827
    %v1829 = vpop.f32.mrb[0].mxu0
    %v1830 = vpop.f32.mrb[0].mxu0
    %1831 = vdwg.mxu0
    %v1832 = vmax.f32 %v1826, 0.0
    %v1833 = vmax.f32 %v1828, 0.0
    %v1834 = vpack.c.bf16 %v1832, %v1832
    %v1835 = vpack.c.bf16 %v1833, %v1833
    %1836 = vmatprep.subr.bf16.mxu0 0
    %1837 = vmatpush1.bf16.msra.mxu0 %v1481
    %1838 = vmatprep.subr.bf16.mxu0 0
    %1839 = vmatpush1.bf16.msra.mxu0 %v1482
    %1840 = vmatprep.subr.bf16.mxu0 0
    %1841 = vmatpush1.bf16.msra.mxu0 %v1483
    %1842 = vmatprep.subr.bf16.mxu0 0
    %1843 = vmatpush1.bf16.msra.mxu0 %v1484
    %1844 = vmatprep.subr.bf16.mxu0 0
    %1845 = vmatpush1.bf16.msra.mxu0 %v1485
    %1846 = vmatprep.subr.bf16.mxu0 0
    %1847 = vmatpush1.bf16.msra.mxu0 %v1486
    %1848 = vmatprep.subr.bf16.mxu0 0
    %1849 = vmatpush1.bf16.msra.mxu0 %v1487
    %1850 = vmatprep.subr.bf16.mxu0 0
    %1851 = vmatpush1.bf16.msra.mxu0 %v1488
    %1852 = vmatprep.subr.bf16.mxu0 0
    %1853 = vmatpush1.bf16.msra.mxu0 %v1489
    %1854 = vmatprep.subr.bf16.mxu0 0
    %1855 = vmatpush1.bf16.msra.mxu0 %v1490
    %1856 = vmatprep.subr.bf16.mxu0 0
    %1857 = vmatpush1.bf16.msra.mxu0 %v1491
    %1858 = vmatprep.subr.bf16.mxu0 0
    %1859 = vmatpush1.bf16.msra.mxu0 %v1492
    %1860 = vmatprep.subr.bf16.mxu0 0
    %1861 = vmatpush1.bf16.msra.mxu0 %v1493
    %1862 = vmatprep.subr.bf16.mxu0 0
    %1863 = vmatpush1.bf16.msra.mxu0 %v1494
    %1864 = vmatprep.subr.bf16.mxu0 0
    %1865 = vmatpush1.bf16.msra.mxu0 %v1495
    %1866 = vmatprep.subr.bf16.mxu0 0
    %1867 = vmatpush1.bf16.msra.mxu0 %v1496
    %1868 = vmatprep.mubr.bf16.mxu0 %v1835
    %1869 = vmatmul.mubr.bf16.gmra.mrb[0].mxu0 %v1834
    %v1870 = vpop.f32.mrb[0].mxu0
    %v1871 = vadd.f32 %v1415, %v1870
    %v1872 = vpop.f32.mrb[0].mxu0
    %v1873 = vpop.f32.mrb[0].mxu0
    %v1874 = vpop.f32.mrb[0].mxu0
    %1875 = vdwg.mxu0
    %1876 = vst [vmem:[#allocation12] sm:$0x3] %v1871
    %v1877 = vld [vmem:[%s2] sm:$0x3f]
    %v1879 = vcombine.high %v1877, %v1877
    %v1881 = vunpack.c.l.s4 1983009808
    %v1882 = vunpack.c.0.s8 %v1881
    %v1883 = vlaneseq
    %v1884 = vshrl.u32 %v1883, 7
    %v1885 = vsub.s32 %v1882, %v1884
    %v1886 = vrot.slane %v1877, %v1885
    %v1888 = vunpack.c.l.s4 1983009808
    %v1889 = vunpack.c.0.s8 %v1888
    %v1890 = vlaneseq
    %v1891 = vshrl.u32 %v1890, 7
    %v1892 = vsub.s32 %v1889, %v1891
    %v1893 = vrot.slane %v1879, %v1892
    %v1894 = vcombine.high %v1886, %v1886
    %v1898 = vpack.c.bf16 %v1886, %v1886
    %v1899 = vpack.c.bf16 %v1894, %v1894
    %v1900 = vpack.c.bf16 %v1893, %v1893
    %1901 = vmatprep.subr.bf16.mxu0 %v631
    %1902 = vmatpush1.bf16.msra.mxu0 %v630
    %1903 = vmatprep.subr.bf16.mxu0 %v635
    %1904 = vmatpush1.bf16.msra.mxu0 %v634
    %1905 = vmatprep.subr.bf16.mxu0 %v639
    %1906 = vmatpush1.bf16.msra.mxu0 %v638
    %1907 = vmatprep.subr.bf16.mxu0 %v643
    %1908 = vmatpush1.bf16.msra.mxu0 %v642
    %1909 = vmatprep.subr.bf16.mxu0 %v647
    %1910 = vmatpush1.bf16.msra.mxu0 %v646
    %1911 = vmatprep.subr.bf16.mxu0 %v651
    %1912 = vmatpush1.bf16.msra.mxu0 %v650
    %1913 = vmatprep.subr.bf16.mxu0 %v655
    %1914 = vmatpush1.bf16.msra.mxu0 %v654
    %1915 = vmatprep.subr.bf16.mxu0 %v659
    %1916 = vmatpush1.bf16.msra.mxu0 %v658
    %1917 = vmatprep.subr.bf16.mxu0 %v663
    %1918 = vmatpush1.bf16.msra.mxu0 %v662
    %1919 = vmatprep.subr.bf16.mxu0 %v667
    %1920 = vmatpush1.bf16.msra.mxu0 %v666
    %1921 = vmatprep.subr.bf16.mxu0 %v671
    %1922 = vmatpush1.bf16.msra.mxu0 %v670
    %1923 = vmatprep.subr.bf16.mxu0 %v675
    %1924 = vmatpush1.bf16.msra.mxu0 %v674
    %1925 = vmatprep.subr.bf16.mxu0 %v679
    %1926 = vmatpush1.bf16.msra.mxu0 %v678
    %1927 = vmatprep.subr.bf16.mxu0 %v683
    %1928 = vmatpush1.bf16.msra.mxu0 %v682
    %1929 = vmatprep.subr.bf16.mxu0 %v687
    %1930 = vmatpush1.bf16.msra.mxu0 %v686
    %1931 = vmatprep.subr.bf16.mxu0 %v691
    %1932 = vmatpush1.bf16.msra.mxu0 %v690
    %1933 = vmatprep.mubr.bf16.mxu0 %v1899
    %1934 = vmatmul.mubr.bf16.gmra.mrb[0].mxu0 %v1898
    %v1935 = vpop.f32.mrb[0].mxu0
    %v1936 = vadd.f32 %v325, %v1935
    %v1937 = vpop.f32.mrb[0].mxu0
    %v1938 = vadd.f32 %v329, %v1937
    %v1939 = vpop.f32.mrb[0].mxu0
    %v1940 = vpop.f32.mrb[0].mxu0
    %1941 = vdwg.mxu0
    %1942 = vmatprep.subr.bf16.mxu0 %v695
    %1943 = vmatpush1.bf16.msra.mxu0 %v694
    %1944 = vmatprep.subr.bf16.mxu0 %v699
    %1945 = vmatpush1.bf16.msra.mxu0 %v698
    %1946 = vmatprep.subr.bf16.mxu0 %v703
    %1947 = vmatpush1.bf16.msra.mxu0 %v702
    %1948 = vmatprep.subr.bf16.mxu0 %v707
    %1949 = vmatpush1.bf16.msra.mxu0 %v706
    %1950 = vmatprep.subr.bf16.mxu0 %v711
    %1951 = vmatpush1.bf16.msra.mxu0 %v710
    %1952 = vmatprep.subr.bf16.mxu0 %v715
    %1953 = vmatpush1.bf16.msra.mxu0 %v714
    %1954 = vmatprep.subr.bf16.mxu0 %v719
    %1955 = vmatpush1.bf16.msra.mxu0 %v718
    %1956 = vmatprep.subr.bf16.mxu0 %v723
    %1957 = vmatpush1.bf16.msra.mxu0 %v722
    %1958 = vmatprep.subr.bf16.mxu0 0
    %1959 = vmatpush1.bf16.msra.mxu0 0
    %1960 = vmatprep.subr.bf16.mxu0 0
    %1961 = vmatpush1.bf16.msra.mxu0 0
    %1962 = vmatprep.subr.bf16.mxu0 0
    %1963 = vmatpush1.bf16.msra.mxu0 0
    %1964 = vmatprep.subr.bf16.mxu0 0
    %1965 = vmatpush1.bf16.msra.mxu0 0
    %1966 = vmatprep.subr.bf16.mxu0 0
    %1967 = vmatpush1.bf16.msra.mxu0 0
    %1968 = vmatprep.subr.bf16.mxu0 0
    %1969 = vmatpush1.bf16.msra.mxu0 0
    %1970 = vmatprep.subr.bf16.mxu0 0
    %1971 = vmatpush1.bf16.msra.mxu0 0
    %1972 = vmatprep.subr.bf16.mxu0 0
    %1973 = vmatpush1.bf16.msra.mxu0 0
    %1974 = vmatprep.mubr.bf16.mxu0 0
    %1975 = vmatmul.mubr.bf16.gmra.mrb[0].mxu0 %v1900
    %v1976 = vpop.f32.mrb[0].mxu0
    %v1977 = vadd.f32 %v1936, %v1976
    %v1978 = vpop.f32.mrb[0].mxu0
    %v1979 = vadd.f32 %v1938, %v1978
    %v1980 = vpop.f32.mrb[0].mxu0
    %v1981 = vpop.f32.mrb[0].mxu0
    %1982 = vdwg.mxu0
    %1983 = vmatprep.subr.bf16.mxu0 %v633
    %1984 = vmatpush1.bf16.msra.mxu0 %v632
    %1985 = vmatprep.subr.bf16.mxu0 %v637
    %1986 = vmatpush1.bf16.msra.mxu0 %v636
    %1987 = vmatprep.subr.bf16.mxu0 %v641
    %1988 = vmatpush1.bf16.msra.mxu0 %v640
    %1989 = vmatprep.subr.bf16.mxu0 %v645
    %1990 = vmatpush1.bf16.msra.mxu0 %v644
    %1991 = vmatprep.subr.bf16.mxu0 %v649
    %1992 = vmatpush1.bf16.msra.mxu0 %v648
    %1993 = vmatprep.subr.bf16.mxu0 %v653
    %1994 = vmatpush1.bf16.msra.mxu0 %v652
    %1995 = vmatprep.subr.bf16.mxu0 %v657
    %1996 = vmatpush1.bf16.msra.mxu0 %v656
    %1997 = vmatprep.subr.bf16.mxu0 %v661
    %1998 = vmatpush1.bf16.msra.mxu0 %v660
    %1999 = vmatprep.subr.bf16.mxu0 %v665
    %2000 = vmatpush1.bf16.msra.mxu0 %v664
    %2001 = vmatprep.subr.bf16.mxu0 %v669
    %2002 = vmatpush1.bf16.msra.mxu0 %v668
    %2003 = vmatprep.subr.bf16.mxu0 %v673
    %2004 = vmatpush1.bf16.msra.mxu0 %v672
    %2005 = vmatprep.subr.bf16.mxu0 %v677
    %2006 = vmatpush1.bf16.msra.mxu0 %v676
    %2007 = vmatprep.subr.bf16.mxu0 %v681
    %2008 = vmatpush1.bf16.msra.mxu0 %v680
    %2009 = vmatprep.subr.bf16.mxu0 %v685
    %2010 = vmatpush1.bf16.msra.mxu0 %v684
    %2011 = vmatprep.subr.bf16.mxu0 %v689
    %2012 = vmatpush1.bf16.msra.mxu0 %v688
    %2013 = vmatprep.subr.bf16.mxu0 %v693
    %2014 = vmatpush1.bf16.msra.mxu0 %v692
    %2015 = vmatprep.mubr.bf16.mxu0 %v1899
    %2016 = vmatmul.mubr.bf16.gmra.mrb[0].mxu0 %v1898
    %v2017 = vpop.f32.mrb[0].mxu0
    %v2018 = vadd.f32 %v333, %v2017
    %v2019 = vpop.f32.mrb[0].mxu0
    %v2020 = vadd.f32 %v337, %v2019
    %v2021 = vpop.f32.mrb[0].mxu0
    %v2022 = vpop.f32.mrb[0].mxu0
    %2023 = vdwg.mxu0
    %2024 = vmatprep.subr.bf16.mxu0 %v697
    %2025 = vmatpush1.bf16.msra.mxu0 %v696
    %2026 = vmatprep.subr.bf16.mxu0 %v701
    %2027 = vmatpush1.bf16.msra.mxu0 %v700
    %2028 = vmatprep.subr.bf16.mxu0 %v705
    %2029 = vmatpush1.bf16.msra.mxu0 %v704
    %2030 = vmatprep.subr.bf16.mxu0 %v709
    %2031 = vmatpush1.bf16.msra.mxu0 %v708
    %2032 = vmatprep.subr.bf16.mxu0 %v713
    %2033 = vmatpush1.bf16.msra.mxu0 %v712
    %2034 = vmatprep.subr.bf16.mxu0 %v717
    %2035 = vmatpush1.bf16.msra.mxu0 %v716
    %2036 = vmatprep.subr.bf16.mxu0 %v721
    %2037 = vmatpush1.bf16.msra.mxu0 %v720
    %2038 = vmatprep.subr.bf16.mxu0 %v725
    %2039 = vmatpush1.bf16.msra.mxu0 %v724
    %2040 = vmatprep.subr.bf16.mxu0 0
    %2041 = vmatpush1.bf16.msra.mxu0 0
    %2042 = vmatprep.subr.bf16.mxu0 0
    %2043 = vmatpush1.bf16.msra.mxu0 0
    %2044 = vmatprep.subr.bf16.mxu0 0
    %2045 = vmatpush1.bf16.msra.mxu0 0
    %2046 = vmatprep.subr.bf16.mxu0 0
    %2047 = vmatpush1.bf16.msra.mxu0 0
    %2048 = vmatprep.subr.bf16.mxu0 0
    %2049 = vmatpush1.bf16.msra.mxu0 0
    %2050 = vmatprep.subr.bf16.mxu0 0
    %2051 = vmatpush1.bf16.msra.mxu0 0
    %2052 = vmatprep.subr.bf16.mxu0 0
    %2053 = vmatpush1.bf16.msra.mxu0 0
    %2054 = vmatprep.subr.bf16.mxu0 0
    %2055 = vmatpush1.bf16.msra.mxu0 0
    %2056 = vmatprep.mubr.bf16.mxu0 0
    %2057 = vmatmul.mubr.bf16.gmra.mrb[0].mxu0 %v1900
    %v2058 = vpop.f32.mrb[0].mxu0
    %v2059 = vadd.f32 %v2018, %v2058
    %v2060 = vpop.f32.mrb[0].mxu0
    %v2061 = vadd.f32 %v2020, %v2060
    %v2062 = vpop.f32.mrb[0].mxu0
    %v2063 = vpop.f32.mrb[0].mxu0
    %2064 = vdwg.mxu0
    %v2065 = vmax.f32 %v1977, 0.0
    %v2066 = vmax.f32 %v1979, 0.0
    %v2067 = vmax.f32 %v2059, 0.0
    %v2068 = vmax.f32 %v2061, 0.0
    %v2069 = vpack.c.bf16 %v2065, %v2065
    %v2070 = vpack.c.bf16 %v2066, %v2066
    %v2071 = vpack.c.bf16 %v2067, %v2067
    %v2072 = vpack.c.bf16 %v2068, %v2068
    %2073 = vmatprep.subr.bf16.mxu0 %v1198
    %2074 = vmatpush1.bf16.msra.mxu0 %v1197
    %2075 = vmatprep.subr.bf16.mxu0 %v1200
    %2076 = vmatpush1.bf16.msra.mxu0 %v1199
    %2077 = vmatprep.subr.bf16.mxu0 %v1202
    %2078 = vmatpush1.bf16.msra.mxu0 %v1201
    %2079 = vmatprep.subr.bf16.mxu0 %v1204
    %2080 = vmatpush1.bf16.msra.mxu0 %v1203
    %2081 = vmatprep.subr.bf16.mxu0 %v1206
    %2082 = vmatpush1.bf16.msra.mxu0 %v1205
    %2083 = vmatprep.subr.bf16.mxu0 %v1208
    %2084 = vmatpush1.bf16.msra.mxu0 %v1207
    %2085 = vmatprep.subr.bf16.mxu0 %v1210
    %2086 = vmatpush1.bf16.msra.mxu0 %v1209
    %2087 = vmatprep.subr.bf16.mxu0 %v1212
    %2088 = vmatpush1.bf16.msra.mxu0 %v1211
    %2089 = vmatprep.subr.bf16.mxu0 %v1214
    %2090 = vmatpush1.bf16.msra.mxu0 %v1213
    %2091 = vmatprep.subr.bf16.mxu0 %v1216
    %2092 = vmatpush1.bf16.msra.mxu0 %v1215
    %2093 = vmatprep.subr.bf16.mxu0 %v1218
    %2094 = vmatpush1.bf16.msra.mxu0 %v1217
    %2095 = vmatprep.subr.bf16.mxu0 %v1220
    %2096 = vmatpush1.bf16.msra.mxu0 %v1219
    %2097 = vmatprep.subr.bf16.mxu0 %v1222
    %2098 = vmatpush1.bf16.msra.mxu0 %v1221
    %2099 = vmatprep.subr.bf16.mxu0 %v1224
    %2100 = vmatpush1.bf16.msra.mxu0 %v1223
    %2101 = vmatprep.subr.bf16.mxu0 %v1226
    %2102 = vmatpush1.bf16.msra.mxu0 %v1225
    %2103 = vmatprep.subr.bf16.mxu0 %v1228
    %2104 = vmatpush1.bf16.msra.mxu0 %v1227
    %2105 = vmatprep.mubr.bf16.mxu0 %v2070
    %2106 = vmatmul.mubr.bf16.gmra.mrb[0].mxu0 %v2069
    %v2107 = vpop.f32.mrb[0].mxu0
    %v2108 = vadd.f32 %v998, %v2107
    %v2109 = vpop.f32.mrb[0].mxu0
    %v2110 = vadd.f32 %v1002, %v2109
    %v2111 = vpop.f32.mrb[0].mxu0
    %v2112 = vpop.f32.mrb[0].mxu0
    %2113 = vdwg.mxu0
    %2114 = vmatprep.subr.bf16.mxu0 %v1230
    %2115 = vmatpush1.bf16.msra.mxu0 %v1229
    %2116 = vmatprep.subr.bf16.mxu0 %v1232
    %2117 = vmatpush1.bf16.msra.mxu0 %v1231
    %2118 = vmatprep.subr.bf16.mxu0 %v1234
    %2119 = vmatpush1.bf16.msra.mxu0 %v1233
    %2120 = vmatprep.subr.bf16.mxu0 %v1236
    %2121 = vmatpush1.bf16.msra.mxu0 %v1235
    %2122 = vmatprep.subr.bf16.mxu0 %v1238
    %2123 = vmatpush1.bf16.msra.mxu0 %v1237
    %2124 = vmatprep.subr.bf16.mxu0 %v1240
    %2125 = vmatpush1.bf16.msra.mxu0 %v1239
    %2126 = vmatprep.subr.bf16.mxu0 %v1242
    %2127 = vmatpush1.bf16.msra.mxu0 %v1241
    %2128 = vmatprep.subr.bf16.mxu0 %v1244
    %2129 = vmatpush1.bf16.msra.mxu0 %v1243
    %2130 = vmatprep.subr.bf16.mxu0 %v1246
    %2131 = vmatpush1.bf16.msra.mxu0 %v1245
    %2132 = vmatprep.subr.bf16.mxu0 %v1248
    %2133 = vmatpush1.bf16.msra.mxu0 %v1247
    %2134 = vmatprep.subr.bf16.mxu0 %v1250
    %2135 = vmatpush1.bf16.msra.mxu0 %v1249
    %2136 = vmatprep.subr.bf16.mxu0 %v1252
    %2137 = vmatpush1.bf16.msra.mxu0 %v1251
    %2138 = vmatprep.subr.bf16.mxu0 %v1254
    %2139 = vmatpush1.bf16.msra.mxu0 %v1253
    %2140 = vmatprep.subr.bf16.mxu0 %v1256
    %2141 = vmatpush1.bf16.msra.mxu0 %v1255
    %2142 = vmatprep.subr.bf16.mxu0 %v1258
    %2143 = vmatpush1.bf16.msra.mxu0 %v1257
    %2144 = vmatprep.subr.bf16.mxu0 %v1260
    %2145 = vmatpush1.bf16.msra.mxu0 %v1259
    %2146 = vmatprep.mubr.bf16.mxu0 %v2072
    %2147 = vmatmul.mubr.bf16.gmra.mrb[0].mxu0 %v2071
    %v2148 = vpop.f32.mrb[0].mxu0
    %v2149 = vadd.f32 %v2108, %v2148
    %v2150 = vpop.f32.mrb[0].mxu0
    %v2151 = vadd.f32 %v2110, %v2150
    %v2152 = vpop.f32.mrb[0].mxu0
    %v2153 = vpop.f32.mrb[0].mxu0
    %2154 = vdwg.mxu0
    %v2155 = vmax.f32 %v2149, 0.0
    %v2156 = vmax.f32 %v2151, 0.0
    %v2157 = vpack.c.bf16 %v2155, %v2155
    %v2158 = vpack.c.bf16 %v2156, %v2156
    %2159 = vmatprep.subr.bf16.mxu0 0
    %2160 = vmatpush1.bf16.msra.mxu0 %v1481
    %2161 = vmatprep.subr.bf16.mxu0 0
    %2162 = vmatpush1.bf16.msra.mxu0 %v1482
    %2163 = vmatprep.subr.bf16.mxu0 0
    %2164 = vmatpush1.bf16.msra.mxu0 %v1483
    %2165 = vmatprep.subr.bf16.mxu0 0
    %2166 = vmatpush1.bf16.msra.mxu0 %v1484
    %2167 = vmatprep.subr.bf16.mxu0 0
    %2168 = vmatpush1.bf16.msra.mxu0 %v1485
    %2169 = vmatprep.subr.bf16.mxu0 0
    %2170 = vmatpush1.bf16.msra.mxu0 %v1486
    %2171 = vmatprep.subr.bf16.mxu0 0
    %2172 = vmatpush1.bf16.msra.mxu0 %v1487
    %2173 = vmatprep.subr.bf16.mxu0 0
    %2174 = vmatpush1.bf16.msra.mxu0 %v1488
    %2175 = vmatprep.subr.bf16.mxu0 0
    %2176 = vmatpush1.bf16.msra.mxu0 %v1489
    %2177 = vmatprep.subr.bf16.mxu0 0
    %2178 = vmatpush1.bf16.msra.mxu0 %v1490
    %2179 = vmatprep.subr.bf16.mxu0 0
    %2180 = vmatpush1.bf16.msra.mxu0 %v1491
    %2181 = vmatprep.subr.bf16.mxu0 0
    %2182 = vmatpush1.bf16.msra.mxu0 %v1492
    %2183 = vmatprep.subr.bf16.mxu0 0
    %2184 = vmatpush1.bf16.msra.mxu0 %v1493
    %2185 = vmatprep.subr.bf16.mxu0 0
    %2186 = vmatpush1.bf16.msra.mxu0 %v1494
    %2187 = vmatprep.subr.bf16.mxu0 0
    %2188 = vmatpush1.bf16.msra.mxu0 %v1495
    %2189 = vmatprep.subr.bf16.mxu0 0
    %2190 = vmatpush1.bf16.msra.mxu0 %v1496
    %2191 = vmatprep.mubr.bf16.mxu0 %v2158
    %2192 = vmatmul.mubr.bf16.gmra.mrb[0].mxu0 %v2157
    %v2193 = vpop.f32.mrb[0].mxu0
    %v2194 = vadd.f32 %v1415, %v2193
    %v2195 = vpop.f32.mrb[0].mxu0
    %v2196 = vpop.f32.mrb[0].mxu0
    %v2197 = vpop.f32.mrb[0].mxu0
    %2198 = vdwg.mxu0
    %2199 = vst [vmem:[#allocation14] sm:$0x3] %v2194
    // Predicated region
    $region58: #{siamese_forward.1} parent=1 // pred_check
      _
    $region59: #{siamese_forward.1} parent=1 // pred_check_branch
      %2201 = sbr.rel (0) target = $region61
    $region60: #{siamese_forward.1} parent=1 // pred_region
      %s2203 = ssub.s32 32, 32
      %2204 = vsyncadd [#allocation4], %s2203
      %s2206 = sshll.u32 [#allocation11], 4
      %s2207 = int_to_ptr.vmem [resolvable:$true] %s2206
      %2209 = dma.vmem_to_hbm [thread:$0]  %s2207, 32, %s9, [#allocation4]
    $region61: #{siamese_forward.1} parent=1 // pred_fallthru
      _
    // Predicated region
    $region62: #{siamese_forward.1} parent=1 // pred_check
      _
    $region63: #{siamese_forward.1} parent=1 // pred_check_branch
      %2211 = sbr.rel (0) target = $region65
    $region64: #{siamese_forward.1} parent=1 // pred_region
      %s2213 = ssub.s32 32, 32
      %2214 = vsyncadd [#allocation13], %s2213
      %s2216 = sshll.u32 [#allocation12], 4
      %s2217 = int_to_ptr.vmem [resolvable:$true] %s2216
      %2219 = dma.vmem_to_hbm [thread:$0]  %s2217, 32, %s10, [#allocation13]
    $region65: #{siamese_forward.1} parent=1 // pred_fallthru
      _
    // Predicated region
    $region66: #{siamese_forward.1} parent=1 // pred_check
      _
    $region67: #{siamese_forward.1} parent=1 // pred_check_branch
      %2221 = sbr.rel (0) target = $region69
    $region68: #{siamese_forward.1} parent=1 // pred_region
      %s2223 = ssub.s32 32, 32
      %2224 = vsyncadd [#allocation13], %s2223
      %s2226 = sshll.u32 [#allocation14], 4
      %s2227 = int_to_ptr.vmem [resolvable:$true] %s2226
      %2229 = dma.vmem_to_hbm [thread:$0]  %s2227, 32, %s11, [#allocation13]
    $region69: #{siamese_forward.1} parent=1 // pred_fallthru
      _
    // Predicated region
    $region70: #{siamese_forward.1} parent=1 // pred_check
      _
    $region71: #{siamese_forward.1} parent=1 // pred_check_branch
      %2231 = sbr.rel (0) target = $region73
    $region72: #{siamese_forward.1} parent=1 // pred_region
      %2232 = dma.done [#allocation4], 32
    $region73: #{siamese_forward.1} parent=1 // pred_fallthru
      _
    // Predicated region
    $region74: #{siamese_forward.1} parent=1 // pred_check
      _
    $region75: #{siamese_forward.1} parent=1 // pred_check_branch
      %2234 = sbr.rel (0) target = $region77
    $region76: #{siamese_forward.1} parent=1 // pred_region
      %2235 = dma.done [#allocation13], 32
    $region77: #{siamese_forward.1} parent=1 // pred_fallthru
      _
    // Predicated region
    $region78: #{siamese_forward.1} parent=1 // pred_check
      _
    $region79: #{siamese_forward.1} parent=1 // pred_check_branch
      %2237 = sbr.rel (0) target = $region81
    $region80: #{siamese_forward.1} parent=1 // pred_region
      %2238 = dma.done [#allocation13], 32
    $region81: #{siamese_forward.1} parent=1 // pred_fallthru
      _
    %2239 = vsyncpa [#allocation3], 1
    %2240 = vsyncpa [#allocation6], 1
    %2241 = vsyncpa [#allocation9], 1
    %2242 = vsyncpa [#allocation4], 1
    %2243 = vsyncpa [#allocation13], 1

</llo_original>
